<compile_context>
chip_gen: v5e
topology: v5e:2x2
jax: 0.10.0
libtpu: 0.0.40
codegen_flags: <defaults>
</compile_context>

<pallas_src>
import functools

import jax
import jax.numpy as jnp
from jax.experimental import pallas as pl
from jax.experimental.pallas import tpu as pltpu


def _round_up(x, m):
    return ((x + m - 1) // m) * m


# ----------------------------------------------------------------------------
# Pallas kernel: stacked-K conv matmul + folded-BN shift + ReLU + halo mask
# ----------------------------------------------------------------------------
def _conv_bn_relu_kernel(x_ref, w_ref, shift_ref, mask_ref, o_ref, *,
                         offsets, stacked):
    """One batch image per grid step, channel-major, spatial on lanes.

    x_ref     : [Cin,  L_in ]      bf16  flattened canvas (zero halo) image
    w_ref     : [Cout, T*Cin]      bf16  (stacked) or [T, Cout, Cin] (per-tap)
    shift_ref : [Cout, 1]          f32   fused conv-bias + BN shift
    mask_ref  : [1,    L_out]      f32   1.0 on valid output-canvas pixels
    o_ref     : [Cout, L_out]            lane-dense output (L_out % 128 == 0)
    """
    L_out = o_ref.shape[-1]
    # Per-tap slices come straight from the VMEM ref (vld slots), never a
    # full-image register value.
    taps = [x_ref[:, off:off + L_out] for off in offsets]

    if stacked:
        # One MXU dot with K = T*Cin (better K-fill, no serial accumulation).
        rhs = taps[0] if len(taps) == 1 else jnp.concatenate(taps, axis=0)
        acc = jnp.dot(w_ref[...], rhs, preferred_element_type=jnp.float32)
    else:
        # Sublane-misaligned stacking: per-tap dots, pairwise tree reduction
        # (breaks the serial MRF chain vs. a running accumulator).
        parts = [jnp.dot(w_ref[t], taps[t], preferred_element_type=jnp.float32)
                 for t in range(len(taps))]
        while len(parts) > 1:
            nxt = [parts[i] + parts[i + 1] for i in range(0, len(parts) - 1, 2)]
            if len(parts) % 2:
                nxt.append(parts[-1])
            parts = nxt
        acc = parts[0]

    y = jnp.maximum(acc + shift_ref[...], 0.0) * mask_ref[...]
    o_ref[...] = y.astype(o_ref.dtype)


def _fused_conv_call(rhs, w, shift, mask, *, offsets, L_out, out_dtype, stacked):
    """out[n] = (relu(W @ stacked_taps(rhs[n]) + shift) * mask).astype(out_dtype)."""
    N, Cin, L_in = rhs.shape
    Cout = shift.shape[0]
    T = len(offsets)

    kernel = functools.partial(_conv_bn_relu_kernel,
                               offsets=tuple(int(o) for o in offsets),
                               stacked=bool(stacked))

    flops = 2 * N * Cout * T * Cin * L_out
    bytes_accessed = (rhs.size * rhs.dtype.itemsize
                      + w.size * w.dtype.itemsize
                      + shift.size * shift.dtype.itemsize
                      + mask.size * mask.dtype.itemsize
                      + N * Cout * L_out * jnp.dtype(out_dtype).itemsize)

    # VMEM budget derived from the actual (double-buffered) block sizes,
    # capped at 64 MiB so it is also safe on v7x (64 MiB VMEM per TensorCore).
    blk_bytes = (Cin * L_in * rhs.dtype.itemsize
                 + w.size * w.dtype.itemsize
                 + shift.size * shift.dtype.itemsize
                 + mask.size * mask.dtype.itemsize
                 + Cout * L_out * jnp.dtype(out_dtype).itemsize)
    vmem_limit = int(min(64 * 1024 * 1024, max(8 * 1024 * 1024, 8 * blk_bytes)))

    return pl.pallas_call(
        kernel,
        out_shape=jax.ShapeDtypeStruct((N, Cout, L_out), out_dtype),
        grid_spec=pltpu.PrefetchScalarGridSpec(
            num_scalar_prefetch=0,
            # TODO(synk): add a parallel lane-tile axis (grid=(N, RT)) for more
            #             pipelined steps per TensorCore on v7x at small batch.
            grid=(N,),
            in_specs=[
                pl.BlockSpec((None, Cin, L_in), lambda n: (n, 0, 0)),
                pl.BlockSpec(w.shape, lambda n: (0,) * w.ndim),
                pl.BlockSpec((Cout, 1), lambda n: (0, 0)),
                pl.BlockSpec((1, L_out), lambda n: (0, 0)),
            ],
            out_specs=pl.BlockSpec((None, Cout, L_out), lambda n: (n, 0, 0)),
        ),
        compiler_params=pltpu.CompilerParams(
            dimension_semantics=("parallel",),
            vmem_limit_bytes=vmem_limit,
        ),
        cost_estimate=pl.CostEstimate(flops=int(flops), transcendentals=0,
                                      bytes_accessed=int(bytes_accessed)),
    )(rhs, w, shift, mask)


# ----------------------------------------------------------------------------
# Canvas helpers (chained, stride-1, spatially-preserving streams)
# ----------------------------------------------------------------------------
def _interior_mask(H, W, Wr, r0, L):
    """[1, L] f32 mask: 1.0 on the H x W image interior at canvas origin r0."""
    n_rows = -(-L // Wr)
    m = jnp.pad(jnp.ones((H, W), jnp.float32),
                ((r0, n_rows - r0 - H), (r0, Wr - r0 - W)))
    return m.reshape(1, n_rows * Wr)[:, :L]


def _stream_canvas_forward(x, cfg, folded):
    """All layers stride-1, dilation-1, 2*pad == k-1: one shared canvas layout
    per stream so every layer writes directly into the next layer's padded
    input slab (no wrapper-side repacking between layers)."""
    N, Cin0, H, W = x.shape
    M = len(cfg)
    ks = [c[0] for c in cfg]
    ps = [c[2] for c in cfg]
    Wr = W + 2 * sum(ps)                              # shared row stride
    r = [sum(ps[l:]) for l in range(M + 1)]           # canvas origin per slab

    # slab lane lengths (multiples of 128), computed back-to-front
    L = [0] * (M + 1)
    L[M] = _round_up(H * Wr, 128)
    for l in range(M, 0, -1):
        max_off = (ks[l - 1] - 1) * (Wr + 1)
        L[l - 1] = _round_up(max(L[l] + max_off, (r[l - 1] + H) * Wr), 128)

    # pack x into slab 0 (zero halo) once; this is the only input repack
    n_rows0 = -(-L[0] // Wr)
    x0 = jnp.pad(x, ((0, 0), (0, 0),
                     (r[0], n_rows0 - r[0] - H),
                     (r[0], Wr - r[0] - W)))
    slab = x0.reshape(N, Cin0, n_rows0 * Wr)[:, :, :L[0]].astype(jnp.bfloat16)
    c_prev = Cin0
    last_Cout = Cin0

    for l in range(1, M + 1):
        k, _, _ = cfg[l - 1]
        w_s, shift = folded[l - 1]                    # [Cout, Cin_real, k, k], [Cout]
        Cout = w_s.shape[0]
        Cin_real = w_s.shape[1]
        is_final = (l == M)
        out_dtype = jnp.float32 if is_final else jnp.bfloat16
        c_mult = 8 if is_final else 16                # sublane tile for out dtype
        Cout_pad = _round_up(Cout, c_mult)

        if c_prev > Cin_real:                         # previous Cout was padded
            w_s = jnp.pad(w_s, ((0, 0), (0, c_prev - Cin_real), (0, 0), (0, 0)))
        if Cout_pad > Cout:
            w_s = jnp.pad(w_s, ((0, Cout_pad - Cout), (0, 0), (0, 0), (0, 0)))
            shift = jnp.pad(shift, (0, Cout_pad - Cout))

        T = k * k
        offsets = tuple(di * Wr + dj for di in range(k) for dj in range(k))
        stacked = (T == 1) or (c_prev % 16 == 0)      # bf16 rhs sublane tile
        if stacked:
            w_mat = jnp.transpose(w_s, (0, 2, 3, 1)).reshape(Cout_pad, T * c_prev)
        else:
            w_mat = jnp.transpose(w_s, (2, 3, 0, 1)).reshape(T, Cout_pad, c_prev)

        mask = _interior_mask(H, W, Wr, r[l], L[l])
        slab = _fused_conv_call(slab,
                                w_mat.astype(jnp.bfloat16),
                                shift.reshape(Cout_pad, 1).astype(jnp.float32),
                                mask,
                                offsets=offsets, L_out=L[l],
                                out_dtype=out_dtype, stacked=stacked)
        c_prev = Cout_pad
        last_Cout = Cout

    # final slab has origin 0 -> unpack to NCHW (single unavoidable slice)
    out = slab[:, :last_Cout, :H * Wr].reshape(N, last_Cout, H, Wr)
    return out[:, :, :, :W]


# ----------------------------------------------------------------------------
# Generic fallback (strided / dilated / shrinking convs): wrapper-side im2col
# ----------------------------------------------------------------------------
def _generic_conv_layer(x, w_s, shift, k, s, p, dilation, out_dtype):
    # TODO(synk): this fallback materializes im2col in HBM (k*k x traffic).
    N, Cin, H, W = x.shape
    Cout = w_s.shape[0]
    xp = jnp.pad(x, ((0, 0), (0, 0), (p, p), (p, p)))
    Hp, Wp = H + 2 * p, W + 2 * p
    Ho = (Hp - dilation * (k - 1) - 1) // s + 1
    Wo = (Wp - dilation * (k - 1) - 1) // s + 1
    cols = [xp[:, :, di * dilation: di * dilation + (Ho - 1) * s + 1: s,
                     dj * dilation: dj * dilation + (Wo - 1) * s + 1: s]
            for di in range(k) for dj in range(k)]
    patches = jnp.stack(cols, axis=1).reshape(N, k * k * Cin, Ho * Wo)

    L_out = _round_up(Ho * Wo, 128)
    rhs = jnp.pad(patches, ((0, 0), (0, 0), (0, L_out - Ho * Wo)))
    c_mult = 8 if out_dtype == jnp.float32 else 16
    Cout_pad = _round_up(Cout, c_mult)
    w_mat = jnp.transpose(w_s, (0, 2, 3, 1)).reshape(Cout, k * k * Cin)
    if Cout_pad > Cout:
        w_mat = jnp.pad(w_mat, ((0, Cout_pad - Cout), (0, 0)))
        shift = jnp.pad(shift, (0, Cout_pad - Cout))
    mask = jnp.ones((1, L_out), jnp.float32)

    out = _fused_conv_call(rhs.astype(jnp.bfloat16),
                           w_mat.astype(jnp.bfloat16),
                           shift.reshape(Cout_pad, 1).astype(jnp.float32),
                           mask, offsets=(0,), L_out=L_out,
                           out_dtype=out_dtype, stacked=True)
    return out[:, :Cout, :Ho * Wo].reshape(N, Cout, Ho, Wo)


# ----------------------------------------------------------------------------
# Parameters (deterministic, mimicking Conv2d(bias=True) + BatchNorm2d)
# ----------------------------------------------------------------------------
def _init_conv_layer(key, cin, cout, k):
    kw_key, b_key, g_key, be_key = jax.random.split(key, 4)
    fan_in = cin * k * k
    bound = 1.0 / (fan_in ** 0.5)
    w = jax.random.uniform(kw_key, (cout, cin, k, k), jnp.float32, -bound, bound)
    b = jax.random.uniform(b_key, (cout,), jnp.float32, -bound, bound)
    gamma = 1.0 + 0.1 * jax.random.normal(g_key, (cout,), jnp.float32)
    beta = 0.1 * jax.random.normal(be_key, (cout,), jnp.float32)
    return dict(w=w, b=b, gamma=gamma, beta=beta,
                rmean=jnp.zeros((cout,), jnp.float32),
                rvar=jnp.ones((cout,), jnp.float32))


def _fold_bn(prm, eps=1e-5):
    """Fold inference-mode BN into (scaled weights, per-channel shift)."""
    g = prm["gamma"] / jnp.sqrt(prm["rvar"] + eps)
    w_scaled = prm["w"] * g[:, None, None, None]
    shift = (prm["b"] - prm["rmean"]) * g + prm["beta"]
    return w_scaled, shift


# ----------------------------------------------------------------------------
# InceptionBlock: parallel streams of chained conv layers, concat on channels
# ----------------------------------------------------------------------------
class InceptionBlockPallas:
    def __init__(self, input_ch, filters, kernel_sizes, stride, padding,
                 groups=1, dilation=1, seed=0):
        assert len(filters) == len(kernel_sizes) == len(stride) == len(padding)
        assert groups == 1  # TODO(synk): grouped convolutions not implemented.
        self.dilation = dilation
        self.cfg, self.raw, self.folded = [], [], []
        key = jax.random.PRNGKey(seed)
        for i in range(len(filters)):
            cin = input_ch
            s_cfg, s_raw, s_fold = [], [], []
            for j in range(len(filters[i])):
                key, sub = jax.random.split(key)
                cout, k = filters[i][j], kernel_sizes[i][j]
                prm = _init_conv_layer(sub, cin, cout, k)
                s_raw.append(prm)
                s_fold.append(_fold_bn(prm))
                s_cfg.append((k, stride[i][j], padding[i][j]))
                cin = cout
            self.cfg.append(s_cfg)
            self.raw.append(s_raw)
            self.folded.append(s_fold)

    def _stream_forward(self, x, si):
        cfg, folded = self.cfg[si], self.folded[si]
        canvas_ok = (self.dilation == 1 and
                     all(s == 1 and 2 * p == k - 1 for (k, s, p) in cfg))
        if canvas_ok:
            return _stream_canvas_forward(x, cfg, folded)
        h = x
        for li, (k, s, p) in enumerate(cfg):
            final = li == len(cfg) - 1
            w_s, shift = folded[li]
            h = _generic_conv_layer(h, w_s, shift, k, s, p, self.dilation,
                                    jnp.float32 if final else jnp.bfloat16)
        return h.astype(jnp.float32)

    def __call__(self, x_nchw):
        outs = [self._stream_forward(x_nchw, si) for si in range(len(self.cfg))]
        # torch.cat(out, dim=1)
        return jnp.concatenate([o.astype(jnp.float32) for o in outs], axis=1)


# ----------------------------------------------------------------------------
# Pure-JAX f32 reference (Conv2d(bias) -> BatchNorm2d(eval) -> ReLU per layer)
# ----------------------------------------------------------------------------
def _reference_forward(block, x, eps=1e-5):
    outs = []
    for si in range(len(block.cfg)):
        h = x
        for (k, s, p), prm in zip(block.cfg[si], block.raw[si]):
            y = jax.lax.conv_general_dilated(
                h, prm["w"], window_strides=(s, s), padding=[(p, p), (p, p)],
                rhs_dilation=(block.dilation, block.dilation),
                dimension_numbers=("NCHW", "OIHW", "NCHW"))
            y = y + prm["b"][None, :, None, None]
            g = prm["gamma"] / jnp.sqrt(prm["rvar"] + eps)
            y = (y - prm["rmean"][None, :, None, None]) * g[None, :, None, None] \
                + prm["beta"][None, :, None, None]
            h = jnp.maximum(y, 0.0)
        outs.append(h)
    return jnp.concatenate(outs, axis=1)


if __name__ == "__main__":
    # stream 0: 1x1 conv -> 8 filters
    # stream 1: 1x1 conv -> 4 filters, then 3x3 conv (pad 1) -> 8 filters
    block = InceptionBlockPallas(
        input_ch=4,
        filters=[[8], [4, 8]],
        kernel_sizes=[[1], [1, 3]],
        stride=[[1], [1, 1]],
        padding=[[0], [0, 1]],
        seed=0,
    )

    key = jax.random.PRNGKey(0)
    x = jax.random.normal(key, (2, 4, 16, 16), jnp.float32)   # NCHW like PyTorch

    fwd = jax.jit(block.__call__)
    out = fwd(x)
    jax.block_until_ready(out)

    assert out.shape == (2, 16, 16, 16), out.shape            # channels 8 + 8 = 16

    # Correctness vs. pure-JAX f32 reference (loose tol: MXU operands are bf16).
    ref = _reference_forward(block, x)
    err = float(jnp.max(jnp.abs(out - ref)))
    assert err < 0.15, f"max abs err vs f32 reference too large: {err}"

    print("KERNEL_OK")
</pallas_src>

<mosaic_0001>
module attributes {stable_mosaic.version = 11 : i64} {
  func.func @_conv_bn_relu_kernel(%arg0: i32, %arg1: memref<1x4x256xbf16, #tpu.memory_space<vmem>>, %arg2: memref<8x4xbf16, #tpu.memory_space<vmem>>, %arg3: memref<8x1xf32, #tpu.memory_space<vmem>>, %arg4: memref<1x256xf32, #tpu.memory_space<vmem>>, %arg5: memref<1x8x256xf32, #tpu.memory_space<vmem>>) attributes {dimension_semantics = [#tpu.dimension_semantics<parallel>], iteration_bounds = array<i64: 2>, scalar_prefetch = 0 : i64, scratch_operands = 0 : i64, tpu.core_type = #tpu.core_type<tc>, window_params = [{transform_indices = @transform_0, window_bounds = array<i64: 1, 4, 256>}, {pipeline_mode = #tpu.pipeline_mode<synchronous>, transform_indices = @transform_1, window_bounds = array<i64: 8, 4>}, {pipeline_mode = #tpu.pipeline_mode<synchronous>, transform_indices = @transform_2, window_bounds = array<i64: 8, 1>}, {pipeline_mode = #tpu.pipeline_mode<synchronous>, transform_indices = @transform_3, window_bounds = array<i64: 1, 256>}, {transform_indices = @transform_4, window_bounds = array<i64: 1, 8, 256>}]} {
    %c0 = arith.constant 0 : index
    %c0_0 = arith.constant 0 : index
    %c0_1 = arith.constant 0 : index
    %0 = vector.load %arg1[%c0, %c0_0, %c0_1] : memref<1x4x256xbf16, #tpu.memory_space<vmem>>, vector<1x4x256xbf16>
    %1 = vector.shape_cast %0 : vector<1x4x256xbf16> to vector<4x256xbf16>
    %c0_2 = arith.constant 0 : index
    %c0_3 = arith.constant 0 : index
    %2 = vector.load %arg2[%c0_2, %c0_3] : memref<8x4xbf16, #tpu.memory_space<vmem>>, vector<8x4xbf16>
    %cst = arith.constant dense<0.000000e+00> : vector<8x256xf32>
    %3 = tpu.matmul %2, %1, %cst {dimension_numbers = #tpu.dot_dimension_numbers<[1], [0], [0], [1], [0, 0, 1, 1], [], []>} : vector<8x4xbf16>, vector<4x256xbf16>, vector<8x256xf32> -> vector<8x256xf32>
    %c0_4 = arith.constant 0 : index
    %c0_5 = arith.constant 0 : index
    %4 = vector.load %arg3[%c0_4, %c0_5] : memref<8x1xf32, #tpu.memory_space<vmem>>, vector<8x1xf32>
    %5 = vector.broadcast %4 : vector<8x1xf32> to vector<8x256xf32>
    %6 = arith.addf %3, %5 : vector<8x256xf32>
    %cst_6 = arith.constant 0.000000e+00 : f32
    %7 = vector.broadcast %cst_6 : f32 to vector<8x256xf32>
    %8 = arith.maximumf %6, %7 : vector<8x256xf32>
    %c0_7 = arith.constant 0 : index
    %c0_8 = arith.constant 0 : index
    %9 = vector.load %arg4[%c0_7, %c0_8] : memref<1x256xf32, #tpu.memory_space<vmem>>, vector<1x256xf32>
    %10 = vector.broadcast %9 : vector<1x256xf32> to vector<8x256xf32>
    %11 = arith.mulf %8, %10 : vector<8x256xf32>
    %c0_9 = arith.constant 0 : index
    %c0_10 = arith.constant 0 : index
    %c0_11 = arith.constant 0 : index
    %12 = vector.load %arg5[%c0_9, %c0_10, %c0_11] : memref<1x8x256xf32, #tpu.memory_space<vmem>>, vector<1x8x256xf32>
    %13 = vector.shape_cast %12 : vector<1x8x256xf32> to vector<8x256xf32>
    %14 = vector.shape_cast %11 : vector<8x256xf32> to vector<1x8x256xf32>
    tpu.vector_store %arg5[%c0_9, %c0_10, %c0_11], %14 {strides = array<i32>} : memref<1x8x256xf32, #tpu.memory_space<vmem>>, vector<1x8x256xf32>,
    return
  }
  func.func @transform_0(%arg0: i32) -> (i32, i32, i32) {
    %c0_i32 = arith.constant 0 : i32
    %c0_i32_0 = arith.constant 0 : i32
    %c0_i32_1 = arith.constant 0 : i32
    return %arg0, %c0_i32, %c0_i32_0 : i32, i32, i32
  }
  func.func @transform_1(%arg0: i32) -> (i32, i32) {
    %c0_i32 = arith.constant 0 : i32
    %c0_i32_0 = arith.constant 0 : i32
    %c0_i32_1 = arith.constant 0 : i32
    return %c0_i32, %c0_i32_0 : i32, i32
  }
  func.func @transform_2(%arg0: i32) -> (i32, i32) {
    %c0_i32 = arith.constant 0 : i32
    %c0_i32_0 = arith.constant 0 : i32
    %c0_i32_1 = arith.constant 0 : i32
    return %c0_i32, %c0_i32_0 : i32, i32
  }
  func.func @transform_3(%arg0: i32) -> (i32, i32) {
    %c0_i32 = arith.constant 0 : i32
    %c0_i32_0 = arith.constant 0 : i32
    %c0_i32_1 = arith.constant 0 : i32
    return %c0_i32, %c0_i32_0 : i32, i32
  }
  func.func @transform_4(%arg0: i32) -> (i32, i32, i32) {
    %c0_i32 = arith.constant 0 : i32
    %c0_i32_0 = arith.constant 0 : i32
    %c0_i32_1 = arith.constant 0 : i32
    return %arg0, %c0_i32, %c0_i32_0 : i32, i32, i32
  }
}

module attributes {stable_mosaic.version = 11 : i64} {
  func.func @_conv_bn_relu_kernel(%arg0: i32, %arg1: memref<1x16x512xbf16, #tpu.memory_space<vmem>>, %arg2: memref<8x144xbf16, #tpu.memory_space<vmem>>, %arg3: memref<8x1xf32, #tpu.memory_space<vmem>>, %arg4: memref<1x384xf32, #tpu.memory_space<vmem>>, %arg5: memref<1x8x384xf32, #tpu.memory_space<vmem>>) attributes {dimension_semantics = [#tpu.dimension_semantics<parallel>], iteration_bounds = array<i64: 2>, scalar_prefetch = 0 : i64, scratch_operands = 0 : i64, tpu.core_type = #tpu.core_type<tc>, window_params = [{transform_indices = @transform_0, window_bounds = array<i64: 1, 16, 512>}, {pipeline_mode = #tpu.pipeline_mode<synchronous>, transform_indices = @transform_1, window_bounds = array<i64: 8, 144>}, {pipeline_mode = #tpu.pipeline_mode<synchronous>, transform_indices = @transform_2, window_bounds = array<i64: 8, 1>}, {pipeline_mode = #tpu.pipeline_mode<synchronous>, transform_indices = @transform_3, window_bounds = array<i64: 1, 384>}, {transform_indices = @transform_4, window_bounds = array<i64: 1, 8, 384>}]} {
    %c0 = arith.constant 0 : index
    %c0_0 = arith.constant 0 : index
    %c0_1 = arith.constant 0 : index
    %0 = vector.load %arg1[%c0, %c0_0, %c0_1] : memref<1x16x512xbf16, #tpu.memory_space<vmem>>, vector<1x16x384xbf16>
    %1 = vector.shape_cast %0 : vector<1x16x384xbf16> to vector<16x384xbf16>
    %c0_2 = arith.constant 0 : index
    %c0_3 = arith.constant 0 : index
    %c1 = arith.constant 1 : index
    %2 = vector.load %arg1[%c0_2, %c0_3, %c1] : memref<1x16x512xbf16, #tpu.memory_space<vmem>>, vector<1x16x384xbf16>
    %3 = vector.shape_cast %2 : vector<1x16x384xbf16> to vector<16x384xbf16>
    %c0_4 = arith.constant 0 : index
    %c0_5 = arith.constant 0 : index
    %c2 = arith.constant 2 : index
    %4 = vector.load %arg1[%c0_4, %c0_5, %c2] : memref<1x16x512xbf16, #tpu.memory_space<vmem>>, vector<1x16x384xbf16>
    %5 = vector.shape_cast %4 : vector<1x16x384xbf16> to vector<16x384xbf16>
    %c0_6 = arith.constant 0 : index
    %c0_7 = arith.constant 0 : index
    %c18 = arith.constant 18 : index
    %6 = vector.load %arg1[%c0_6, %c0_7, %c18] : memref<1x16x512xbf16, #tpu.memory_space<vmem>>, vector<1x16x384xbf16>
    %7 = vector.shape_cast %6 : vector<1x16x384xbf16> to vector<16x384xbf16>
    %c0_8 = arith.constant 0 : index
    %c0_9 = arith.constant 0 : index
    %c19 = arith.constant 19 : index
    %8 = vector.load %arg1[%c0_8, %c0_9, %c19] : memref<1x16x512xbf16, #tpu.memory_space<vmem>>, vector<1x16x384xbf16>
    %9 = vector.shape_cast %8 : vector<1x16x384xbf16> to vector<16x384xbf16>
    %c0_10 = arith.constant 0 : index
    %c0_11 = arith.constant 0 : index
    %c20 = arith.constant 20 : index
    %10 = vector.load %arg1[%c0_10, %c0_11, %c20] : memref<1x16x512xbf16, #tpu.memory_space<vmem>>, vector<1x16x384xbf16>
    %11 = vector.shape_cast %10 : vector<1x16x384xbf16> to vector<16x384xbf16>
    %c0_12 = arith.constant 0 : index
    %c0_13 = arith.constant 0 : index
    %c36 = arith.constant 36 : index
    %12 = vector.load %arg1[%c0_12, %c0_13, %c36] : memref<1x16x512xbf16, #tpu.memory_space<vmem>>, vector<1x16x384xbf16>
    %13 = vector.shape_cast %12 : vector<1x16x384xbf16> to vector<16x384xbf16>
    %c0_14 = arith.constant 0 : index
    %c0_15 = arith.constant 0 : index
    %c37 = arith.constant 37 : index
    %14 = vector.load %arg1[%c0_14, %c0_15, %c37] : memref<1x16x512xbf16, #tpu.memory_space<vmem>>, vector<1x16x384xbf16>
    %15 = vector.shape_cast %14 : vector<1x16x384xbf16> to vector<16x384xbf16>
    %c0_16 = arith.constant 0 : index
    %c0_17 = arith.constant 0 : index
    %c38 = arith.constant 38 : index
    %16 = vector.load %arg1[%c0_16, %c0_17, %c38] : memref<1x16x512xbf16, #tpu.memory_space<vmem>>, vector<1x16x384xbf16>
    %17 = vector.shape_cast %16 : vector<1x16x384xbf16> to vector<16x384xbf16>
    %18 = tpu.concatenate %1, %3, %5, %7, %9, %11, %13, %15, %17 in 0 : vector<16x384xbf16>, vector<16x384xbf16>, vector<16x384xbf16>, vector<16x384xbf16>, vector<16x384xbf16>, vector<16x384xbf16>, vector<16x384xbf16>, vector<16x384xbf16>, vector<16x384xbf16> -> vector<144x384xbf16>
    %c0_18 = arith.constant 0 : index
    %c0_19 = arith.constant 0 : index
    %19 = vector.load %arg2[%c0_18, %c0_19] : memref<8x144xbf16, #tpu.memory_space<vmem>>, vector<8x144xbf16>
    %cst = arith.constant dense<0.000000e+00> : vector<8x384xf32>
    %20 = tpu.matmul %19, %18, %cst {dimension_numbers = #tpu.dot_dimension_numbers<[1], [0], [0], [1], [0, 0, 1, 1], [], []>} : vector<8x144xbf16>, vector<144x384xbf16>, vector<8x384xf32> -> vector<8x384xf32>
    %c0_20 = arith.constant 0 : index
    %c0_21 = arith.constant 0 : index
    %21 = vector.load %arg3[%c0_20, %c0_21] : memref<8x1xf32, #tpu.memory_space<vmem>>, vector<8x1xf32>
    %22 = vector.broadcast %21 : vector<8x1xf32> to vector<8x384xf32>
    %23 = arith.addf %20, %22 : vector<8x384xf32>
    %cst_22 = arith.constant 0.000000e+00 : f32
    %24 = vector.broadcast %cst_22 : f32 to vector<8x384xf32>
    %25 = arith.maximumf %23, %24 : vector<8x384xf32>
    %c0_23 = arith.constant 0 : index
    %c0_24 = arith.constant 0 : index
    %26 = vector.load %arg4[%c0_23, %c0_24] : memref<1x384xf32, #tpu.memory_space<vmem>>, vector<1x384xf32>
    %27 = vector.broadcast %26 : vector<1x384xf32> to vector<8x384xf32>
    %28 = arith.mulf %25, %27 : vector<8x384xf32>
    %c0_25 = arith.constant 0 : index
    %c0_26 = arith.constant 0 : index
    %c0_27 = arith.constant 0 : index
    %29 = vector.load %arg5[%c0_25, %c0_26, %c0_27] : memref<1x8x384xf32, #tpu.memory_space<vmem>>, vector<1x8x384xf32>
    %30 = vector.shape_cast %29 : vector<1x8x384xf32> to vector<8x384xf32>
    %31 = vector.shape_cast %28 : vector<8x384xf32> to vector<1x8x384xf32>
    tpu.vector_store %arg5[%c0_25, %c0_26, %c0_27], %31 {strides = array<i32>} : memref<1x8x384xf32, #tpu.memory_space<vmem>>, vector<1x8x384xf32>,
    return
  }
  func.func @transform_0(%arg0: i32) -> (i32, i32, i32) {
    %c0_i32 = arith.constant 0 : i32
    %c0_i32_0 = arith.constant 0 : i32
    %c0_i32_1 = arith.constant 0 : i32
    return %arg0, %c0_i32, %c0_i32_0 : i32, i32, i32
  }
  func.func @transform_1(%arg0: i32) -> (i32, i32) {
    %c0_i32 = arith.constant 0 : i32
    %c0_i32_0 = arith.constant 0 : i32
    %c0_i32_1 = arith.constant 0 : i32
    return %c0_i32, %c0_i32_0 : i32, i32
  }
  func.func @transform_2(%arg0: i32) -> (i32, i32) {
    %c0_i32 = arith.constant 0 : i32
    %c0_i32_0 = arith.constant 0 : i32
    %c0_i32_1 = arith.constant 0 : i32
    return %c0_i32, %c0_i32_0 : i32, i32
  }
  func.func @transform_3(%arg0: i32) -> (i32, i32) {
    %c0_i32 = arith.constant 0 : i32
    %c0_i32_0 = arith.constant 0 : i32
    %c0_i32_1 = arith.constant 0 : i32
    return %c0_i32, %c0_i32_0 : i32, i32
  }
  func.func @transform_4(%arg0: i32) -> (i32, i32, i32) {
    %c0_i32 = arith.constant 0 : i32
    %c0_i32_0 = arith.constant 0 : i32
    %c0_i32_1 = arith.constant 0 : i32
    return %arg0, %c0_i32, %c0_i32_0 : i32, i32, i32
  }
}

module attributes {stable_mosaic.version = 11 : i64} {
  func.func @_conv_bn_relu_kernel(%arg0: i32, %arg1: memref<1x4x512xbf16, #tpu.memory_space<vmem>>, %arg2: memref<16x4xbf16, #tpu.memory_space<vmem>>, %arg3: memref<16x1xf32, #tpu.memory_space<vmem>>, %arg4: memref<1x512xf32, #tpu.memory_space<vmem>>, %arg5: memref<1x16x512xbf16, #tpu.memory_space<vmem>>) attributes {dimension_semantics = [#tpu.dimension_semantics<parallel>], iteration_bounds = array<i64: 2>, scalar_prefetch = 0 : i64, scratch_operands = 0 : i64, tpu.core_type = #tpu.core_type<tc>, window_params = [{transform_indices = @transform_0, window_bounds = array<i64: 1, 4, 512>}, {pipeline_mode = #tpu.pipeline_mode<synchronous>, transform_indices = @transform_1, window_bounds = array<i64: 16, 4>}, {pipeline_mode = #tpu.pipeline_mode<synchronous>, transform_indices = @transform_2, window_bounds = array<i64: 16, 1>}, {pipeline_mode = #tpu.pipeline_mode<synchronous>, transform_indices = @transform_3, window_bounds = array<i64: 1, 512>}, {transform_indices = @transform_4, window_bounds = array<i64: 1, 16, 512>}]} {
    %c0 = arith.constant 0 : index
    %c0_0 = arith.constant 0 : index
    %c0_1 = arith.constant 0 : index
    %0 = vector.load %arg1[%c0, %c0_0, %c0_1] : memref<1x4x512xbf16, #tpu.memory_space<vmem>>, vector<1x4x512xbf16>
    %1 = vector.shape_cast %0 : vector<1x4x512xbf16> to vector<4x512xbf16>
    %c0_2 = arith.constant 0 : index
    %c0_3 = arith.constant 0 : index
    %2 = vector.load %arg2[%c0_2, %c0_3] : memref<16x4xbf16, #tpu.memory_space<vmem>>, vector<16x4xbf16>
    %cst = arith.constant dense<0.000000e+00> : vector<16x512xf32>
    %3 = tpu.matmul %2, %1, %cst {dimension_numbers = #tpu.dot_dimension_numbers<[1], [0], [0], [1], [0, 0, 1, 1], [], []>} : vector<16x4xbf16>, vector<4x512xbf16>, vector<16x512xf32> -> vector<16x512xf32>
    %c0_4 = arith.constant 0 : index
    %c0_5 = arith.constant 0 : index
    %4 = vector.load %arg3[%c0_4, %c0_5] : memref<16x1xf32, #tpu.memory_space<vmem>>, vector<16x1xf32>
    %5 = vector.broadcast %4 : vector<16x1xf32> to vector<16x512xf32>
    %6 = arith.addf %3, %5 : vector<16x512xf32>
    %cst_6 = arith.constant 0.000000e+00 : f32
    %7 = vector.broadcast %cst_6 : f32 to vector<16x512xf32>
    %8 = arith.maximumf %6, %7 : vector<16x512xf32>
    %c0_7 = arith.constant 0 : index
    %c0_8 = arith.constant 0 : index
    %9 = vector.load %arg4[%c0_7, %c0_8] : memref<1x512xf32, #tpu.memory_space<vmem>>, vector<1x512xf32>
    %10 = vector.broadcast %9 : vector<1x512xf32> to vector<16x512xf32>
    %11 = arith.mulf %8, %10 : vector<16x512xf32>
    %12 = arith.truncf %11 : vector<16x512xf32> to vector<16x512xbf16>
    %c0_9 = arith.constant 0 : index
    %c0_10 = arith.constant 0 : index
    %c0_11 = arith.constant 0 : index
    %13 = vector.load %arg5[%c0_9, %c0_10, %c0_11] : memref<1x16x512xbf16, #tpu.memory_space<vmem>>, vector<1x16x512xbf16>
    %14 = vector.shape_cast %13 : vector<1x16x512xbf16> to vector<16x512xbf16>
    %15 = vector.shape_cast %12 : vector<16x512xbf16> to vector<1x16x512xbf16>
    tpu.vector_store %arg5[%c0_9, %c0_10, %c0_11], %15 {strides = array<i32>} : memref<1x16x512xbf16, #tpu.memory_space<vmem>>, vector<1x16x512xbf16>,
    return
  }
  func.func @transform_0(%arg0: i32) -> (i32, i32, i32) {
    %c0_i32 = arith.constant 0 : i32
    %c0_i32_0 = arith.constant 0 : i32
    %c0_i32_1 = arith.constant 0 : i32
    return %arg0, %c0_i32, %c0_i32_0 : i32, i32, i32
  }
  func.func @transform_1(%arg0: i32) -> (i32, i32) {
    %c0_i32 = arith.constant 0 : i32
    %c0_i32_0 = arith.constant 0 : i32
    %c0_i32_1 = arith.constant 0 : i32
    return %c0_i32, %c0_i32_0 : i32, i32
  }
  func.func @transform_2(%arg0: i32) -> (i32, i32) {
    %c0_i32 = arith.constant 0 : i32
    %c0_i32_0 = arith.constant 0 : i32
    %c0_i32_1 = arith.constant 0 : i32
    return %c0_i32, %c0_i32_0 : i32, i32
  }
  func.func @transform_3(%arg0: i32) -> (i32, i32) {
    %c0_i32 = arith.constant 0 : i32
    %c0_i32_0 = arith.constant 0 : i32
    %c0_i32_1 = arith.constant 0 : i32
    return %c0_i32, %c0_i32_0 : i32, i32
  }
  func.func @transform_4(%arg0: i32) -> (i32, i32, i32) {
    %c0_i32 = arith.constant 0 : i32
    %c0_i32_0 = arith.constant 0 : i32
    %c0_i32_1 = arith.constant 0 : i32
    return %arg0, %c0_i32, %c0_i32_0 : i32, i32, i32
  }
}

</mosaic_0001>

<llo_original>
// kernel: a_call__.3
$region0: #{a_call__.3}
  #allocation0 [shape = 'u32[]', space=smem, size = 0x4, offset = 0x4, fixed_abs, tag = 'smem constant byte address 0x4 - core index']
  #allocation1 [shape = 'u32[72,128]{1,0:T(1,128)}', space=vmem, size = 0x9000, scoped, tag = 'internal scratch']
  %s0 = inlined_call_operand.vmem [shape: bf16[2,4,256], index: 0, kind: input, shape index: {}]
  %s1 = inlined_call_operand.vmem [shape: bf16[8,4], index: 1, kind: input, shape index: {}]
  %s2 = inlined_call_operand.vmem [shape: f32[8,1], index: 2, kind: input, shape index: {}]
  %s3 = inlined_call_operand.vmem [shape: f32[1,256], index: 3, kind: input, shape index: {}]
  %s4 = inlined_call_operand.vmem [shape: f32[2,8,256], index: 4, kind: output, shape index: {}]
  %s5 = sld [smem:[#allocation0]]
  $region49: #{a_call__.3} parent=0
    _
  %s7 = ssub.s32 1, %s5
  %s8 = scalar_select 0, %s7, %s5
  loop: start=0, step=1, limit=4
  $region2: #{a_call__.3} parent=0 // loop_pre_header
    _
  $region3: #{a_call__.3} parent=0 // loop_header
    %s10 = sphi 0, %s14
    %p11 = scmp.ge.s32.totalorder %s10, 4
    %s20 = sphi 0, %s22
    %s23 = sphi 0, %s20
    %s24 = sphi 0, %s23
    %s40 = sphi 0, %s24
    %s44 = sphi 0, %s44
    %s46 = sphi 0, %s44
    %s47 = sphi 0, %s46
    %s61 = sphi 0, %s47
    %s65 = sphi 0, %s65
    %s67 = sphi 0, %s65
    %s68 = sphi 0, %s67
    %s82 = sphi 0, %s68
    %s86 = sphi 0, %s86
    %s88 = sphi 0, %s86
    %s89 = sphi 0, %s88
    %s103 = sphi 0, %s89
    %s109 = sphi 0, %s111
    %s112 = sphi 0, %s109
    %s113 = sphi 0, %s112
    %s129 = sphi 0, %s113
  $region4: #{a_call__.3} parent=0 // loop_header_branch
    %13 = sbr.rel (%p11) target = $region8
  $region5: #{a_call__.3} parent=0 // loop_body
    %s15 = ssub.s32 %s10, 1
    %s16 = ssub.s32 %s10, 2
    %s17 = sadd.s32 %s10, 1
    %s18 = ssub.s32 %s10, %s17
    %p19 = scmp.eq.s32.totalorder %s18, 0
    %s21 = sadd.s32 %s20, 1
    %s22 = scalar_select %p19, %s20, %s21
    %p25 = pneg %p19
    %p26 = scmp.eq.s32.totalorder %s10, 1
    %p27 = por %p25, %p26
    %p28 = scmp.ne.s32.totalorder %s20, %s23
    %p29 = scmp.eq.s32.totalorder %s10, 0
    %p30 = por %p28, %p29
    %p31 = scmp.ne.s32.totalorder %s20, %s23
    %p32 = scmp.eq.s32.totalorder %s15, 1
    %p33 = por %p31, %p32
    %p34 = scmp.ne.s32.totalorder %s23, %s24
    %p35 = scmp.eq.s32.totalorder %s15, 0
    %p36 = por %p34, %p35
    %p37 = scmp.ne.s32.totalorder %s23, %s24
    %p38 = scmp.eq.s32.totalorder %s16, 1
    %p39 = por %p37, %p38
    %p41 = scmp.ne.s32.totalorder %s24, %s40
    %p42 = scmp.eq.s32.totalorder %s16, 0
    %p43 = por %p41, %p42
    %s45 = sadd.s32 %s44, 1
    %p48 = scmp.eq.s32.totalorder %s10, 1
    %p49 = scmp.ne.s32.totalorder %s44, %s46
    %p50 = scmp.eq.s32.totalorder %s10, 0
    %p51 = por %p49, %p50
    %p52 = scmp.ne.s32.totalorder %s44, %s46
    %p53 = scmp.eq.s32.totalorder %s15, 1
    %p54 = por %p52, %p53
    %p55 = scmp.ne.s32.totalorder %s46, %s47
    %p56 = scmp.eq.s32.totalorder %s15, 0
    %p57 = por %p55, %p56
    %p58 = scmp.ne.s32.totalorder %s46, %s47
    %p59 = scmp.eq.s32.totalorder %s16, 1
    %p60 = por %p58, %p59
    %p62 = scmp.ne.s32.totalorder %s47, %s61
    %p63 = scmp.eq.s32.totalorder %s16, 0
    %p64 = por %p62, %p63
    %s66 = sadd.s32 %s65, 1
    %p69 = scmp.eq.s32.totalorder %s10, 1
    %p70 = scmp.ne.s32.totalorder %s65, %s67
    %p71 = scmp.eq.s32.totalorder %s10, 0
    %p72 = por %p70, %p71
    %p73 = scmp.ne.s32.totalorder %s65, %s67
    %p74 = scmp.eq.s32.totalorder %s15, 1
    %p75 = por %p73, %p74
    %p76 = scmp.ne.s32.totalorder %s67, %s68
    %p77 = scmp.eq.s32.totalorder %s15, 0
    %p78 = por %p76, %p77
    %p79 = scmp.ne.s32.totalorder %s67, %s68
    %p80 = scmp.eq.s32.totalorder %s16, 1
    %p81 = por %p79, %p80
    %p83 = scmp.ne.s32.totalorder %s68, %s82
    %p84 = scmp.eq.s32.totalorder %s16, 0
    %p85 = por %p83, %p84
    %s87 = sadd.s32 %s86, 1
    %p90 = scmp.eq.s32.totalorder %s10, 1
    %p91 = scmp.ne.s32.totalorder %s86, %s88
    %p92 = scmp.eq.s32.totalorder %s10, 0
    %p93 = por %p91, %p92
    %p94 = scmp.ne.s32.totalorder %s86, %s88
    %p95 = scmp.eq.s32.totalorder %s15, 1
    %p96 = por %p94, %p95
    %p97 = scmp.ne.s32.totalorder %s88, %s89
    %p98 = scmp.eq.s32.totalorder %s15, 0
    %p99 = por %p97, %p98
    %p100 = scmp.ne.s32.totalorder %s88, %s89
    %p101 = scmp.eq.s32.totalorder %s16, 1
    %p102 = por %p100, %p101
    %p104 = scmp.ne.s32.totalorder %s89, %s103
    %p105 = scmp.eq.s32.totalorder %s16, 0
    %p106 = por %p104, %p105
    %s107 = ssub.s32 %s10, %s17
    %p108 = scmp.eq.s32.totalorder %s107, 0
    %s110 = sadd.s32 %s109, 1
    %s111 = scalar_select %p108, %s109, %s110
    %p114 = pneg %p108
    %p115 = scmp.eq.s32.totalorder %s10, 1
    %p116 = por %p114, %p115
    %p117 = scmp.ne.s32.totalorder %s109, %s112
    %p118 = scmp.eq.s32.totalorder %s10, 0
    %p119 = por %p117, %p118
    %p120 = scmp.ne.s32.totalorder %s109, %s112
    %p121 = scmp.eq.s32.totalorder %s15, 1
    %p122 = por %p120, %p121
    %p123 = scmp.ne.s32.totalorder %s112, %s113
    %p124 = scmp.eq.s32.totalorder %s15, 0
    %p125 = por %p123, %p124
    %p126 = scmp.ne.s32.totalorder %s112, %s113
    %p127 = scmp.eq.s32.totalorder %s16, 1
    %p128 = por %p126, %p127
    %p130 = scmp.ne.s32.totalorder %s113, %s129
    %p131 = scmp.eq.s32.totalorder %s16, 0
    %p132 = por %p130, %p131
    %p133 = scmp.le.s32.totalorder 1, %s10
    %p134 = scmp.lt.s32.totalorder %s10, 3
    %p135 = pnand %p133, %p134
    %p136 = pneg %p135
    // Predicated region
    $region9: #{a_call__.3} parent=5 // pred_check
      _
    $region10: #{a_call__.3} parent=5 // pred_check_branch
      %138 = sbr.rel (%p135) target = $region12
    $region11: #{a_call__.3} parent=5 // pred_region
      %s139 = ssub.s32 %s10, 1
      // Predicated region
      $region13: #{a_call__.3} parent=11 // pred_check
        %p140 = pneg %p57
      $region14: #{a_call__.3} parent=11 // pred_check_branch
        %142 = sbr.rel (%p140) target = $region16
      $region15: #{a_call__.3} parent=11 // pred_region
        _
      $region16: #{a_call__.3} parent=11 // pred_fallthru
        _
      // Predicated region
      $region17: #{a_call__.3} parent=11 // pred_check
        %p143 = pneg %p78
      $region18: #{a_call__.3} parent=11 // pred_check_branch
        %145 = sbr.rel (%p143) target = $region20
      $region19: #{a_call__.3} parent=11 // pred_region
        _
      $region20: #{a_call__.3} parent=11 // pred_fallthru
        _
      // Predicated region
      $region21: #{a_call__.3} parent=11 // pred_check
        %p146 = pneg %p99
      $region22: #{a_call__.3} parent=11 // pred_check_branch
        %148 = sbr.rel (%p146) target = $region24
      $region23: #{a_call__.3} parent=11 // pred_region
        _
      $region24: #{a_call__.3} parent=11 // pred_fallthru
        _
    $region12: #{a_call__.3} parent=5 // pred_fallthru
      _
    %p149 = scmp.lt.s32.totalorder %s10, 2
    // Predicated region
    $region25: #{a_call__.3} parent=5 // pred_check
      %p150 = pneg %p149
    $region26: #{a_call__.3} parent=5 // pred_check_branch
      %152 = sbr.rel (%p150) target = $region28
    $region27: #{a_call__.3} parent=5 // pred_region
      // Predicated region
      $region29: #{a_call__.3} parent=27 // pred_check
        %p153 = pneg %p30
      $region30: #{a_call__.3} parent=27 // pred_check_branch
        %155 = sbr.rel (%p153) target = $region32
      $region31: #{a_call__.3} parent=27 // pred_region
        %p156 = scmp.lt.s32.totalorder %s10, 1
        %s157 = scalar_select %p156, %s10, 1
        %s158 = smul.addr %s157, 2
        %s159 = smul.addr %s158, 2
        %s160 = scalar_lea.vmem %s0, %s159
      $region32: #{a_call__.3} parent=27 // pred_fallthru
        _
    $region28: #{a_call__.3} parent=5 // pred_fallthru
      _
    %p161 = scmp.le.s32.totalorder 1, %s10
    %p162 = scmp.lt.s32.totalorder %s10, 3
    %p163 = pnand %p161, %p162
    %p164 = pneg %p163
    // Predicated region
    $region33: #{a_call__.3} parent=5 // pred_check
      _
    $region34: #{a_call__.3} parent=5 // pred_check_branch
      %166 = sbr.rel (%p163) target = $region36
    $region35: #{a_call__.3} parent=5 // pred_region
      %s167 = ssub.s32 %s10, 1
      %p168 = scmp.lt.s32.totalorder %s15, 1
      %s169 = scalar_select %p168, %s15, 1
      %s170 = smul.addr %s169, 2
      %s171 = smul.addr %s170, 2
      %s172 = scalar_lea.vmem %s0, %s171
      %p173 = pneg %p36
      %p174 = pneg %p33
      %p175 = pneg %p57
      %p176 = pneg %p54
      %p177 = pneg %p78
      %p178 = pneg %p75
      %p179 = pneg %p99
      %p180 = pneg %p96
      %p181 = pneg %p125
      %p182 = pneg %p122
      %p183 = scmp.lt.s32.totalorder %s15, 1
      %s184 = scalar_select %p183, %s15, 1
      %s185 = smul.addr %s184, 2
      %s186 = smul.addr %s185, 8
      %s187 = scalar_lea.vmem %s4, %s186
      %p188 = scmp.lt.s32.totalorder %s15, 1
      %s189 = scalar_select %p188, %s15, 1
      %s190 = smul.addr %s189, 2
      %s191 = smul.addr %s190, 2
      %s192 = scalar_lea.vmem %s0, %s191
      %p193 = scmp.lt.s32.totalorder %s15, 1
      %s194 = scalar_select %p193, %s15, 1
      %s195 = smul.addr %s194, 2
      %s196 = smul.addr %s195, 8
      %s197 = scalar_lea.vmem %s4, %s196
      %v199 = vld [vmem:[%s192] sm:$0xf]
      %v200 = vld [vmem:[%s1] sm:$0xf]
      %v201 = vld [vmem:[%s2] sm:$0xff]
      %203 = vset.pattern.permute.xlu0 0
      %204 = vperm.xlu0 %203, %v201
      %v205 = vpop.permute.xlu0 %204
      %208 = vst [vmem:[#allocation1] ss:$4 sm:$0xff] %v199
      %v209 = vld.sshfl [vmem:[#allocation1] sm:$0xff pattern:$0x73625140]
      %v210 = vld.sshfl [vmem:[#allocation1 + $0x8] sm:$0xff pattern:$0x73625140]
      %vm211 = vcmask 31744
      %v213 = vsel %vm211, %v200, 0
      %vm215 = vcmask 1041408
      %v216 = vsel %vm215, %v209, 0
      %v218 = vsel %vm215, %v210, 0
      %220 = vmatpush.bf16.msra.mxu0 0
      %221 = vmatpush.bf16.msra.mxu0 0
      %222 = vmatpush.bf16.msra.mxu0 0
      %223 = vmatpush.bf16.msra.mxu0 0
      %224 = vmatpush.bf16.msra.mxu0 0
      %225 = vmatpush.bf16.msra.mxu0 0
      %226 = vmatpush.bf16.msra.mxu0 0
      %227 = vmatpush.bf16.msra.mxu0 %v216
      %228 = vmatmul.bf16.gmra.mxu0 %v213
      %v229 = vpop.f32.mrf.mxu0
      %v230 = vadd.f32 %v205, %v229
      %v231 = vpop.f32.mrf.mxu0
      %232 = vdwg.mxu0
      %233 = vmatpush.bf16.msra.mxu0 0
      %234 = vmatpush.bf16.msra.mxu0 0
      %235 = vmatpush.bf16.msra.mxu0 0
      %236 = vmatpush.bf16.msra.mxu0 0
      %237 = vmatpush.bf16.msra.mxu0 0
      %238 = vmatpush.bf16.msra.mxu0 0
      %239 = vmatpush.bf16.msra.mxu0 0
      %240 = vmatpush.bf16.msra.mxu0 %v218
      %241 = vmatmul.bf16.gmra.mxu0 %v213
      %v242 = vpop.f32.mrf.mxu0
      %v243 = vadd.f32 %v205, %v242
      %v244 = vpop.f32.mrf.mxu0
      %245 = vdwg.mxu0
      %v246 = vmax.f32 %v230, 0.0
      %v247 = vmax.f32 %v243, 0.0
      %v248 = vld [vmem:[%s3] sm:$0x3]
      %v250 = vperm.slane %v248, 0
      %v251 = vperm.slane %v248, 1
      %v254 = vmul.f32 %v246, %v250
      %v255 = vmul.f32 %v247, %v251
      %256 = vst [vmem:[%s197] sm:$0xff] %v254
      %257 = vst [vmem:[%s197 + $0x8] sm:$0xff] %v255
      %p258 = scmp.lt.s32.totalorder %s15, 1
      %s259 = scalar_select %p258, %s15, 1
      %s260 = smul.addr %s259, 2
      %s261 = smul.addr %s260, 8
      %s262 = scalar_lea.vmem %s4, %s261
      // Predicated region
      $region37: #{a_call__.3} parent=35 // pred_check
        %p263 = pneg %p122
      $region38: #{a_call__.3} parent=35 // pred_check_branch
        %265 = sbr.rel (%p263) target = $region40
      $region39: #{a_call__.3} parent=35 // pred_region
        _
      $region40: #{a_call__.3} parent=35 // pred_fallthru
        _
    $region36: #{a_call__.3} parent=5 // pred_fallthru
      _
    %p266 = scmp.le.s32.totalorder 2, %s10
    // Predicated region
    $region41: #{a_call__.3} parent=5 // pred_check
      %p267 = pneg %p266
    $region42: #{a_call__.3} parent=5 // pred_check_branch
      %269 = sbr.rel (%p267) target = $region44
    $region43: #{a_call__.3} parent=5 // pred_region
      %s270 = ssub.s32 %s10, 2
      // Predicated region
      $region45: #{a_call__.3} parent=43 // pred_check
        %p271 = pneg %p128
      $region46: #{a_call__.3} parent=43 // pred_check_branch
        %273 = sbr.rel (%p271) target = $region48
      $region47: #{a_call__.3} parent=43 // pred_region
        %p274 = scmp.lt.s32.totalorder %s16, 1
        %s275 = scalar_select %p274, %s16, 1
        %s276 = smul.addr %s275, 2
        %s277 = smul.addr %s276, 8
        %s278 = scalar_lea.vmem %s4, %s277
      $region48: #{a_call__.3} parent=43 // pred_fallthru
        _
    $region44: #{a_call__.3} parent=5 // pred_fallthru
      _
  $region6: #{a_call__.3} parent=0 // loop_footer
    %s14 = sadd.s32 1, %s10
  $region7: #{a_call__.3} parent=0 // loop_footer_branch
    %9 = sbr.rel target = $region3
  $region8: #{a_call__.3} parent=0 // loop_exit
    _

// kernel: a_call__.5
$region0: #{a_call__.5}
  #allocation0 [shape = 'u32[]', space=smem, size = 0x4, offset = 0x4, fixed_abs, tag = 'smem constant byte address 0x4 - core index']
  #allocation1 [shape = 'u32[72,128]{1,0:T(1,128)}', space=vmem, size = 0x9000, scoped, tag = 'internal scratch']
  %s0 = inlined_call_operand.vmem [shape: bf16[2,16,512], index: 0, kind: input, shape index: {}]
  %s1 = inlined_call_operand.vmem [shape: bf16[8,144], index: 1, kind: input, shape index: {}]
  %s2 = inlined_call_operand.vmem [shape: f32[8,1], index: 2, kind: input, shape index: {}]
  %s3 = inlined_call_operand.vmem [shape: f32[1,384], index: 3, kind: input, shape index: {}]
  %s4 = inlined_call_operand.vmem [shape: f32[2,8,384], index: 4, kind: output, shape index: {}]
  %s5 = sld [smem:[#allocation0]]
  $region49: #{a_call__.5} parent=0
    _
  %s7 = ssub.s32 1, %s5
  %s8 = scalar_select 0, %s7, %s5
  loop: start=0, step=1, limit=4
  $region2: #{a_call__.5} parent=0 // loop_pre_header
    _
  $region3: #{a_call__.5} parent=0 // loop_header
    %s10 = sphi 0, %s14
    %p11 = scmp.ge.s32.totalorder %s10, 4
    %s20 = sphi 0, %s22
    %s23 = sphi 0, %s20
    %s24 = sphi 0, %s23
    %s40 = sphi 0, %s24
    %s44 = sphi 0, %s44
    %s46 = sphi 0, %s44
    %s47 = sphi 0, %s46
    %s61 = sphi 0, %s47
    %s65 = sphi 0, %s65
    %s67 = sphi 0, %s65
    %s68 = sphi 0, %s67
    %s82 = sphi 0, %s68
    %s86 = sphi 0, %s86
    %s88 = sphi 0, %s86
    %s89 = sphi 0, %s88
    %s103 = sphi 0, %s89
    %s109 = sphi 0, %s111
    %s112 = sphi 0, %s109
    %s113 = sphi 0, %s112
    %s129 = sphi 0, %s113
  $region4: #{a_call__.5} parent=0 // loop_header_branch
    %13 = sbr.rel (%p11) target = $region8
  $region5: #{a_call__.5} parent=0 // loop_body
    %s15 = ssub.s32 %s10, 1
    %s16 = ssub.s32 %s10, 2
    %s17 = sadd.s32 %s10, 1
    %s18 = ssub.s32 %s10, %s17
    %p19 = scmp.eq.s32.totalorder %s18, 0
    %s21 = sadd.s32 %s20, 1
    %s22 = scalar_select %p19, %s20, %s21
    %p25 = pneg %p19
    %p26 = scmp.eq.s32.totalorder %s10, 1
    %p27 = por %p25, %p26
    %p28 = scmp.ne.s32.totalorder %s20, %s23
    %p29 = scmp.eq.s32.totalorder %s10, 0
    %p30 = por %p28, %p29
    %p31 = scmp.ne.s32.totalorder %s20, %s23
    %p32 = scmp.eq.s32.totalorder %s15, 1
    %p33 = por %p31, %p32
    %p34 = scmp.ne.s32.totalorder %s23, %s24
    %p35 = scmp.eq.s32.totalorder %s15, 0
    %p36 = por %p34, %p35
    %p37 = scmp.ne.s32.totalorder %s23, %s24
    %p38 = scmp.eq.s32.totalorder %s16, 1
    %p39 = por %p37, %p38
    %p41 = scmp.ne.s32.totalorder %s24, %s40
    %p42 = scmp.eq.s32.totalorder %s16, 0
    %p43 = por %p41, %p42
    %s45 = sadd.s32 %s44, 1
    %p48 = scmp.eq.s32.totalorder %s10, 1
    %p49 = scmp.ne.s32.totalorder %s44, %s46
    %p50 = scmp.eq.s32.totalorder %s10, 0
    %p51 = por %p49, %p50
    %p52 = scmp.ne.s32.totalorder %s44, %s46
    %p53 = scmp.eq.s32.totalorder %s15, 1
    %p54 = por %p52, %p53
    %p55 = scmp.ne.s32.totalorder %s46, %s47
    %p56 = scmp.eq.s32.totalorder %s15, 0
    %p57 = por %p55, %p56
    %p58 = scmp.ne.s32.totalorder %s46, %s47
    %p59 = scmp.eq.s32.totalorder %s16, 1
    %p60 = por %p58, %p59
    %p62 = scmp.ne.s32.totalorder %s47, %s61
    %p63 = scmp.eq.s32.totalorder %s16, 0
    %p64 = por %p62, %p63
    %s66 = sadd.s32 %s65, 1
    %p69 = scmp.eq.s32.totalorder %s10, 1
    %p70 = scmp.ne.s32.totalorder %s65, %s67
    %p71 = scmp.eq.s32.totalorder %s10, 0
    %p72 = por %p70, %p71
    %p73 = scmp.ne.s32.totalorder %s65, %s67
    %p74 = scmp.eq.s32.totalorder %s15, 1
    %p75 = por %p73, %p74
    %p76 = scmp.ne.s32.totalorder %s67, %s68
    %p77 = scmp.eq.s32.totalorder %s15, 0
    %p78 = por %p76, %p77
    %p79 = scmp.ne.s32.totalorder %s67, %s68
    %p80 = scmp.eq.s32.totalorder %s16, 1
    %p81 = por %p79, %p80
    %p83 = scmp.ne.s32.totalorder %s68, %s82
    %p84 = scmp.eq.s32.totalorder %s16, 0
    %p85 = por %p83, %p84
    %s87 = sadd.s32 %s86, 1
    %p90 = scmp.eq.s32.totalorder %s10, 1
    %p91 = scmp.ne.s32.totalorder %s86, %s88
    %p92 = scmp.eq.s32.totalorder %s10, 0
    %p93 = por %p91, %p92
    %p94 = scmp.ne.s32.totalorder %s86, %s88
    %p95 = scmp.eq.s32.totalorder %s15, 1
    %p96 = por %p94, %p95
    %p97 = scmp.ne.s32.totalorder %s88, %s89
    %p98 = scmp.eq.s32.totalorder %s15, 0
    %p99 = por %p97, %p98
    %p100 = scmp.ne.s32.totalorder %s88, %s89
    %p101 = scmp.eq.s32.totalorder %s16, 1
    %p102 = por %p100, %p101
    %p104 = scmp.ne.s32.totalorder %s89, %s103
    %p105 = scmp.eq.s32.totalorder %s16, 0
    %p106 = por %p104, %p105
    %s107 = ssub.s32 %s10, %s17
    %p108 = scmp.eq.s32.totalorder %s107, 0
    %s110 = sadd.s32 %s109, 1
    %s111 = scalar_select %p108, %s109, %s110
    %p114 = pneg %p108
    %p115 = scmp.eq.s32.totalorder %s10, 1
    %p116 = por %p114, %p115
    %p117 = scmp.ne.s32.totalorder %s109, %s112
    %p118 = scmp.eq.s32.totalorder %s10, 0
    %p119 = por %p117, %p118
    %p120 = scmp.ne.s32.totalorder %s109, %s112
    %p121 = scmp.eq.s32.totalorder %s15, 1
    %p122 = por %p120, %p121
    %p123 = scmp.ne.s32.totalorder %s112, %s113
    %p124 = scmp.eq.s32.totalorder %s15, 0
    %p125 = por %p123, %p124
    %p126 = scmp.ne.s32.totalorder %s112, %s113
    %p127 = scmp.eq.s32.totalorder %s16, 1
    %p128 = por %p126, %p127
    %p130 = scmp.ne.s32.totalorder %s113, %s129
    %p131 = scmp.eq.s32.totalorder %s16, 0
    %p132 = por %p130, %p131
    %p133 = scmp.le.s32.totalorder 1, %s10
    %p134 = scmp.lt.s32.totalorder %s10, 3
    %p135 = pnand %p133, %p134
    %p136 = pneg %p135
    // Predicated region
    $region9: #{a_call__.5} parent=5 // pred_check
      _
    $region10: #{a_call__.5} parent=5 // pred_check_branch
      %138 = sbr.rel (%p135) target = $region12
    $region11: #{a_call__.5} parent=5 // pred_region
      %s139 = ssub.s32 %s10, 1
      // Predicated region
      $region13: #{a_call__.5} parent=11 // pred_check
        %p140 = pneg %p57
      $region14: #{a_call__.5} parent=11 // pred_check_branch
        %142 = sbr.rel (%p140) target = $region16
      $region15: #{a_call__.5} parent=11 // pred_region
        _
      $region16: #{a_call__.5} parent=11 // pred_fallthru
        _
      // Predicated region
      $region17: #{a_call__.5} parent=11 // pred_check
        %p143 = pneg %p78
      $region18: #{a_call__.5} parent=11 // pred_check_branch
        %145 = sbr.rel (%p143) target = $region20
      $region19: #{a_call__.5} parent=11 // pred_region
        _
      $region20: #{a_call__.5} parent=11 // pred_fallthru
        _
      // Predicated region
      $region21: #{a_call__.5} parent=11 // pred_check
        %p146 = pneg %p99
      $region22: #{a_call__.5} parent=11 // pred_check_branch
        %148 = sbr.rel (%p146) target = $region24
      $region23: #{a_call__.5} parent=11 // pred_region
        _
      $region24: #{a_call__.5} parent=11 // pred_fallthru
        _
    $region12: #{a_call__.5} parent=5 // pred_fallthru
      _
    %p149 = scmp.lt.s32.totalorder %s10, 2
    // Predicated region
    $region25: #{a_call__.5} parent=5 // pred_check
      %p150 = pneg %p149
    $region26: #{a_call__.5} parent=5 // pred_check_branch
      %152 = sbr.rel (%p150) target = $region28
    $region27: #{a_call__.5} parent=5 // pred_region
      // Predicated region
      $region29: #{a_call__.5} parent=27 // pred_check
        %p153 = pneg %p30
      $region30: #{a_call__.5} parent=27 // pred_check_branch
        %155 = sbr.rel (%p153) target = $region32
      $region31: #{a_call__.5} parent=27 // pred_region
        %p156 = scmp.lt.s32.totalorder %s10, 1
        %s157 = scalar_select %p156, %s10, 1
        %s158 = smul.addr %s157, 8
        %s159 = smul.addr %s158, 4
        %s160 = scalar_lea.vmem %s0, %s159
      $region32: #{a_call__.5} parent=27 // pred_fallthru
        _
    $region28: #{a_call__.5} parent=5 // pred_fallthru
      _
    %p161 = scmp.le.s32.totalorder 1, %s10
    %p162 = scmp.lt.s32.totalorder %s10, 3
    %p163 = pnand %p161, %p162
    %p164 = pneg %p163
    // Predicated region
    $region33: #{a_call__.5} parent=5 // pred_check
      _
    $region34: #{a_call__.5} parent=5 // pred_check_branch
      %166 = sbr.rel (%p163) target = $region36
    $region35: #{a_call__.5} parent=5 // pred_region
      %s167 = ssub.s32 %s10, 1
      %p168 = scmp.lt.s32.totalorder %s15, 1
      %s169 = scalar_select %p168, %s15, 1
      %s170 = smul.addr %s169, 8
      %s171 = smul.addr %s170, 4
      %s172 = scalar_lea.vmem %s0, %s171
      %p173 = pneg %p36
      %p174 = pneg %p33
      %p175 = pneg %p57
      %p176 = pneg %p54
      %p177 = pneg %p78
      %p178 = pneg %p75
      %p179 = pneg %p99
      %p180 = pneg %p96
      %p181 = pneg %p125
      %p182 = pneg %p122
      %p183 = scmp.lt.s32.totalorder %s15, 1
      %s184 = scalar_select %p183, %s15, 1
      %s185 = smul.addr %s184, 3
      %s186 = smul.addr %s185, 8
      %s187 = scalar_lea.vmem %s4, %s186
      %p188 = scmp.lt.s32.totalorder %s15, 1
      %s189 = scalar_select %p188, %s15, 1
      %s190 = smul.addr %s189, 8
      %s191 = smul.addr %s190, 4
      %s192 = scalar_lea.vmem %s0, %s191
      %p193 = scmp.lt.s32.totalorder %s15, 1
      %s194 = scalar_select %p193, %s15, 1
      %s195 = smul.addr %s194, 3
      %s196 = smul.addr %s195, 8
      %s197 = scalar_lea.vmem %s4, %s196
      %v199 = vld [vmem:[%s192] sm:$0xff]
      %v200 = vld [vmem:[%s192 + $0x8] sm:$0xf]
      %v201 = vld [vmem:[%s192 + $0x10] sm:$0xff]
      %v202 = vld [vmem:[%s192 + $0x18] sm:$0xf]
      %v203 = vld [vmem:[%s192] sm:$0xff]
      %v204 = vld [vmem:[%s192 + $0x8] sm:$0xff]
      %v205 = vld [vmem:[%s192 + $0x10] sm:$0xff]
      %v206 = vld [vmem:[%s192 + $0x18] sm:$0xff]
      %v211 = vunpack.c.l.b16 %v199
      %v212 = vunpack.c.h.b16 %v199
      %v213 = vunpack.c.l.b16 %v200
      %v214 = vunpack.c.l.b16 %v201
      %v215 = vunpack.c.h.b16 %v201
      %v216 = vunpack.c.l.b16 %v202
      %v217 = vpack.c.b16 %v214, %v211
      %v218 = vpack.c.b16 %v215, %v212
      %v219 = vpack.c.b16 %v216, %v213
      %v227 = vunpack.c.l.b16 %v203
      %v228 = vunpack.c.h.b16 %v203
      %v229 = vunpack.c.l.b16 %v204
      %v230 = vunpack.c.h.b16 %v204
      %v231 = vunpack.c.l.b16 %v205
      %v232 = vunpack.c.h.b16 %v205
      %v233 = vunpack.c.l.b16 %v206
      %v234 = vunpack.c.h.b16 %v206
      %v235 = vpack.c.b16 %v231, %v227
      %v236 = vpack.c.b16 %v232, %v228
      %v237 = vpack.c.b16 %v233, %v229
      %v238 = vpack.c.b16 %v234, %v230
      %239 = vrot.lane.b32.xlu0 %v235, 127
      %v240 = vpop.permute.xlu0 %239
      %241 = vrot.lane.b32.xlu0 %v236, 127
      %v242 = vpop.permute.xlu0 %241
      %243 = vrot.lane.b32.xlu0 %v237, 127
      %v244 = vpop.permute.xlu0 %243
      %245 = vrot.lane.b32.xlu0 %v238, 127
      %v246 = vpop.permute.xlu0 %245
      %vm247 = vcmask 1039360
      %v248 = vsel %vm247, %v240, %v242
      %v249 = vsel %vm247, %v242, %v244
      %v250 = vsel %vm247, %v244, %v246
      %254 = vrot.lane.b32.xlu0 %v235, 126
      %v255 = vpop.permute.xlu0 %254
      %256 = vrot.lane.b32.xlu0 %v236, 126
      %v257 = vpop.permute.xlu0 %256
      %258 = vrot.lane.b32.xlu0 %v237, 126
      %v259 = vpop.permute.xlu0 %258
      %260 = vrot.lane.b32.xlu0 %v238, 126
      %v261 = vpop.permute.xlu0 %260
      %vm262 = vcmask 1031168
      %v263 = vsel %vm262, %v255, %v257
      %v264 = vsel %vm262, %v257, %v259
      %v265 = vsel %vm262, %v259, %v261
      %269 = vrot.lane.b32.xlu0 %v235, 110
      %v270 = vpop.permute.xlu0 %269
      %271 = vrot.lane.b32.xlu0 %v236, 110
      %v272 = vpop.permute.xlu0 %271
      %273 = vrot.lane.b32.xlu0 %v237, 110
      %v274 = vpop.permute.xlu0 %273
      %275 = vrot.lane.b32.xlu0 %v238, 110
      %v276 = vpop.permute.xlu0 %275
      %vm277 = vcmask 900096
      %v278 = vsel %vm277, %v270, %v272
      %v279 = vsel %vm277, %v272, %v274
      %v280 = vsel %vm277, %v274, %v276
      %284 = vrot.lane.b32.xlu0 %v235, 109
      %v285 = vpop.permute.xlu0 %284
      %286 = vrot.lane.b32.xlu0 %v236, 109
      %v287 = vpop.permute.xlu0 %286
      %288 = vrot.lane.b32.xlu0 %v237, 109
      %v289 = vpop.permute.xlu0 %288
      %290 = vrot.lane.b32.xlu0 %v238, 109
      %v291 = vpop.permute.xlu0 %290
      %vm292 = vcmask 891904
      %v293 = vsel %vm292, %v285, %v287
      %v294 = vsel %vm292, %v287, %v289
      %v295 = vsel %vm292, %v289, %v291
      %299 = vrot.lane.b32.xlu0 %v235, 108
      %v300 = vpop.permute.xlu0 %299
      %301 = vrot.lane.b32.xlu0 %v236, 108
      %v302 = vpop.permute.xlu0 %301
      %303 = vrot.lane.b32.xlu0 %v237, 108
      %v304 = vpop.permute.xlu0 %303
      %305 = vrot.lane.b32.xlu0 %v238, 108
      %v306 = vpop.permute.xlu0 %305
      %vm307 = vcmask 883712
      %v308 = vsel %vm307, %v300, %v302
      %v309 = vsel %vm307, %v302, %v304
      %v310 = vsel %vm307, %v304, %v306
      %314 = vrot.lane.b32.xlu0 %v235, 92
      %v315 = vpop.permute.xlu0 %314
      %316 = vrot.lane.b32.xlu0 %v236, 92
      %v317 = vpop.permute.xlu0 %316
      %318 = vrot.lane.b32.xlu0 %v237, 92
      %v319 = vpop.permute.xlu0 %318
      %320 = vrot.lane.b32.xlu0 %v238, 92
      %v321 = vpop.permute.xlu0 %320
      %vm322 = vcmask 752640
      %v323 = vsel %vm322, %v315, %v317
      %v324 = vsel %vm322, %v317, %v319
      %v325 = vsel %vm322, %v319, %v321
      %329 = vrot.lane.b32.xlu0 %v235, 91
      %v330 = vpop.permute.xlu0 %329
      %331 = vrot.lane.b32.xlu0 %v236, 91
      %v332 = vpop.permute.xlu0 %331
      %333 = vrot.lane.b32.xlu0 %v237, 91
      %v334 = vpop.permute.xlu0 %333
      %335 = vrot.lane.b32.xlu0 %v238, 91
      %v336 = vpop.permute.xlu0 %335
      %vm337 = vcmask 744448
      %v338 = vsel %vm337, %v330, %v332
      %v339 = vsel %vm337, %v332, %v334
      %v340 = vsel %vm337, %v334, %v336
      %344 = vrot.lane.b32.xlu0 %v235, 90
      %v345 = vpop.permute.xlu0 %344
      %346 = vrot.lane.b32.xlu0 %v236, 90
      %v347 = vpop.permute.xlu0 %346
      %348 = vrot.lane.b32.xlu0 %v237, 90
      %v349 = vpop.permute.xlu0 %348
      %350 = vrot.lane.b32.xlu0 %v238, 90
      %v351 = vpop.permute.xlu0 %350
      %vm352 = vcmask 736256
      %v353 = vsel %vm352, %v345, %v347
      %v354 = vsel %vm352, %v347, %v349
      %v355 = vsel %vm352, %v349, %v351
      %v359 = vld [vmem:[%s1] sm:$0xff]
      %v360 = vld [vmem:[%s2] sm:$0xff]
      %362 = vset.pattern.permute.xlu0 0
      %363 = vperm.xlu0 %362, %v360
      %v364 = vpop.permute.xlu0 %363
      %v367 = vunpack.c.l.b16 %v359
      %v368 = vunpack.c.h.b16 %v359
      %v369 = vpack.c.b16 %v367, %v367
      %v370 = vpack.c.b16 %v368, %v368
      %vm372 = vcmask 130048
      %v374 = vsel %vm372, %v370, 0
      %376 = vmatpush.bf16.msra.mxu0 %v338
      %377 = vmatpush.bf16.msra.mxu0 %v323
      %378 = vmatpush.bf16.msra.mxu0 %v308
      %379 = vmatpush.bf16.msra.mxu0 %v293
      %380 = vmatpush.bf16.msra.mxu0 %v278
      %381 = vmatpush.bf16.msra.mxu0 %v263
      %382 = vmatpush.bf16.msra.mxu0 %v248
      %383 = vmatpush.bf16.msra.mxu0 %v217
      %384 = vmatmul.bf16.gmra.mxu0 %v369
      %v385 = vpop.f32.mrf.mxu0
      %v386 = vadd.f32 %v364, %v385
      %v387 = vpop.f32.mrf.mxu0
      %388 = vdwg.mxu0
      %389 = vmatpush.bf16.msra.mxu0 0
      %390 = vmatpush.bf16.msra.mxu0 0
      %391 = vmatpush.bf16.msra.mxu0 0
      %392 = vmatpush.bf16.msra.mxu0 0
      %393 = vmatpush.bf16.msra.mxu0 0
      %394 = vmatpush.bf16.msra.mxu0 0
      %395 = vmatpush.bf16.msra.mxu0 0
      %396 = vmatpush.bf16.msra.mxu0 %v353
      %397 = vmatmul.bf16.gmra.mxu0 %v374
      %v398 = vpop.f32.mrf.mxu0
      %v399 = vadd.f32 %v386, %v398
      %v400 = vpop.f32.mrf.mxu0
      %401 = vdwg.mxu0
      %402 = vmatpush.bf16.msra.mxu0 %v339
      %403 = vmatpush.bf16.msra.mxu0 %v324
      %404 = vmatpush.bf16.msra.mxu0 %v309
      %405 = vmatpush.bf16.msra.mxu0 %v294
      %406 = vmatpush.bf16.msra.mxu0 %v279
      %407 = vmatpush.bf16.msra.mxu0 %v264
      %408 = vmatpush.bf16.msra.mxu0 %v249
      %409 = vmatpush.bf16.msra.mxu0 %v218
      %410 = vmatmul.bf16.gmra.mxu0 %v369
      %v411 = vpop.f32.mrf.mxu0
      %v412 = vadd.f32 %v364, %v411
      %v413 = vpop.f32.mrf.mxu0
      %414 = vdwg.mxu0
      %415 = vmatpush.bf16.msra.mxu0 0
      %416 = vmatpush.bf16.msra.mxu0 0
      %417 = vmatpush.bf16.msra.mxu0 0
      %418 = vmatpush.bf16.msra.mxu0 0
      %419 = vmatpush.bf16.msra.mxu0 0
      %420 = vmatpush.bf16.msra.mxu0 0
      %421 = vmatpush.bf16.msra.mxu0 0
      %422 = vmatpush.bf16.msra.mxu0 %v354
      %423 = vmatmul.bf16.gmra.mxu0 %v374
      %v424 = vpop.f32.mrf.mxu0
      %v425 = vadd.f32 %v412, %v424
      %v426 = vpop.f32.mrf.mxu0
      %427 = vdwg.mxu0
      %428 = vmatpush.bf16.msra.mxu0 %v340
      %429 = vmatpush.bf16.msra.mxu0 %v325
      %430 = vmatpush.bf16.msra.mxu0 %v310
      %431 = vmatpush.bf16.msra.mxu0 %v295
      %432 = vmatpush.bf16.msra.mxu0 %v280
      %433 = vmatpush.bf16.msra.mxu0 %v265
      %434 = vmatpush.bf16.msra.mxu0 %v250
      %435 = vmatpush.bf16.msra.mxu0 %v219
      %436 = vmatmul.bf16.gmra.mxu0 %v369
      %v437 = vpop.f32.mrf.mxu0
      %v438 = vadd.f32 %v364, %v437
      %v439 = vpop.f32.mrf.mxu0
      %440 = vdwg.mxu0
      %441 = vmatpush.bf16.msra.mxu0 0
      %442 = vmatpush.bf16.msra.mxu0 0
      %443 = vmatpush.bf16.msra.mxu0 0
      %444 = vmatpush.bf16.msra.mxu0 0
      %445 = vmatpush.bf16.msra.mxu0 0
      %446 = vmatpush.bf16.msra.mxu0 0
      %447 = vmatpush.bf16.msra.mxu0 0
      %448 = vmatpush.bf16.msra.mxu0 %v355
      %449 = vmatmul.bf16.gmra.mxu0 %v374
      %v450 = vpop.f32.mrf.mxu0
      %v451 = vadd.f32 %v438, %v450
      %v452 = vpop.f32.mrf.mxu0
      %453 = vdwg.mxu0
      %v454 = vmax.f32 %v399, 0.0
      %v455 = vmax.f32 %v425, 0.0
      %v456 = vmax.f32 %v451, 0.0
      %v457 = vld [vmem:[%s3] sm:$0x7]
      %v459 = vperm.slane %v457, 0
      %v460 = vperm.slane %v457, 1
      %v461 = vperm.slane %v457, 2
      %v465 = vmul.f32 %v454, %v459
      %v466 = vmul.f32 %v455, %v460
      %v467 = vmul.f32 %v456, %v461
      %468 = vst [vmem:[%s197] sm:$0xff] %v465
      %469 = vst [vmem:[%s197 + $0x8] sm:$0xff] %v466
      %470 = vst [vmem:[%s197 + $0x10] sm:$0xff] %v467
      %p471 = scmp.lt.s32.totalorder %s15, 1
      %s472 = scalar_select %p471, %s15, 1
      %s473 = smul.addr %s472, 3
      %s474 = smul.addr %s473, 8
      %s475 = scalar_lea.vmem %s4, %s474
      // Predicated region
      $region37: #{a_call__.5} parent=35 // pred_check
        %p476 = pneg %p122
      $region38: #{a_call__.5} parent=35 // pred_check_branch
        %478 = sbr.rel (%p476) target = $region40
      $region39: #{a_call__.5} parent=35 // pred_region
        _
      $region40: #{a_call__.5} parent=35 // pred_fallthru
        _
    $region36: #{a_call__.5} parent=5 // pred_fallthru
      _
    %p479 = scmp.le.s32.totalorder 2, %s10
    // Predicated region
    $region41: #{a_call__.5} parent=5 // pred_check
      %p480 = pneg %p479
    $region42: #{a_call__.5} parent=5 // pred_check_branch
      %482 = sbr.rel (%p480) target = $region44
    $region43: #{a_call__.5} parent=5 // pred_region
      %s483 = ssub.s32 %s10, 2
      // Predicated region
      $region45: #{a_call__.5} parent=43 // pred_check
        %p484 = pneg %p128
      $region46: #{a_call__.5} parent=43 // pred_check_branch
        %486 = sbr.rel (%p484) target = $region48
      $region47: #{a_call__.5} parent=43 // pred_region
        %p487 = scmp.lt.s32.totalorder %s16, 1
        %s488 = scalar_select %p487, %s16, 1
        %s489 = smul.addr %s488, 3
        %s490 = smul.addr %s489, 8
        %s491 = scalar_lea.vmem %s4, %s490
      $region48: #{a_call__.5} parent=43 // pred_fallthru
        _
    $region44: #{a_call__.5} parent=5 // pred_fallthru
      _
  $region6: #{a_call__.5} parent=0 // loop_footer
    %s14 = sadd.s32 1, %s10
  $region7: #{a_call__.5} parent=0 // loop_footer_branch
    %9 = sbr.rel target = $region3
  $region8: #{a_call__.5} parent=0 // loop_exit
    _

// kernel: a_call__.4
$region0: #{a_call__.4}
  #allocation0 [shape = 'u32[]', space=smem, size = 0x4, offset = 0x4, fixed_abs, tag = 'smem constant byte address 0x4 - core index']
  #allocation1 [shape = 'u32[72,128]{1,0:T(1,128)}', space=vmem, size = 0x9000, scoped, tag = 'internal scratch']
  %s0 = inlined_call_operand.vmem [shape: bf16[2,4,512], index: 0, kind: input, shape index: {}]
  %s1 = inlined_call_operand.vmem [shape: bf16[16,4], index: 1, kind: input, shape index: {}]
  %s2 = inlined_call_operand.vmem [shape: f32[16,1], index: 2, kind: input, shape index: {}]
  %s3 = inlined_call_operand.vmem [shape: f32[1,512], index: 3, kind: input, shape index: {}]
  %s4 = inlined_call_operand.vmem [shape: bf16[2,16,512], index: 4, kind: output, shape index: {}]
  %s5 = sld [smem:[#allocation0]]
  $region49: #{a_call__.4} parent=0
    _
  %s7 = ssub.s32 1, %s5
  %s8 = scalar_select 0, %s7, %s5
  loop: start=0, step=1, limit=4
  $region2: #{a_call__.4} parent=0 // loop_pre_header
    _
  $region3: #{a_call__.4} parent=0 // loop_header
    %s10 = sphi 0, %s14
    %p11 = scmp.ge.s32.totalorder %s10, 4
    %s20 = sphi 0, %s22
    %s23 = sphi 0, %s20
    %s24 = sphi 0, %s23
    %s40 = sphi 0, %s24
    %s44 = sphi 0, %s44
    %s46 = sphi 0, %s44
    %s47 = sphi 0, %s46
    %s61 = sphi 0, %s47
    %s65 = sphi 0, %s65
    %s67 = sphi 0, %s65
    %s68 = sphi 0, %s67
    %s82 = sphi 0, %s68
    %s86 = sphi 0, %s86
    %s88 = sphi 0, %s86
    %s89 = sphi 0, %s88
    %s103 = sphi 0, %s89
    %s109 = sphi 0, %s111
    %s112 = sphi 0, %s109
    %s113 = sphi 0, %s112
    %s129 = sphi 0, %s113
  $region4: #{a_call__.4} parent=0 // loop_header_branch
    %13 = sbr.rel (%p11) target = $region8
  $region5: #{a_call__.4} parent=0 // loop_body
    %s15 = ssub.s32 %s10, 1
    %s16 = ssub.s32 %s10, 2
    %s17 = sadd.s32 %s10, 1
    %s18 = ssub.s32 %s10, %s17
    %p19 = scmp.eq.s32.totalorder %s18, 0
    %s21 = sadd.s32 %s20, 1
    %s22 = scalar_select %p19, %s20, %s21
    %p25 = pneg %p19
    %p26 = scmp.eq.s32.totalorder %s10, 1
    %p27 = por %p25, %p26
    %p28 = scmp.ne.s32.totalorder %s20, %s23
    %p29 = scmp.eq.s32.totalorder %s10, 0
    %p30 = por %p28, %p29
    %p31 = scmp.ne.s32.totalorder %s20, %s23
    %p32 = scmp.eq.s32.totalorder %s15, 1
    %p33 = por %p31, %p32
    %p34 = scmp.ne.s32.totalorder %s23, %s24
    %p35 = scmp.eq.s32.totalorder %s15, 0
    %p36 = por %p34, %p35
    %p37 = scmp.ne.s32.totalorder %s23, %s24
    %p38 = scmp.eq.s32.totalorder %s16, 1
    %p39 = por %p37, %p38
    %p41 = scmp.ne.s32.totalorder %s24, %s40
    %p42 = scmp.eq.s32.totalorder %s16, 0
    %p43 = por %p41, %p42
    %s45 = sadd.s32 %s44, 1
    %p48 = scmp.eq.s32.totalorder %s10, 1
    %p49 = scmp.ne.s32.totalorder %s44, %s46
    %p50 = scmp.eq.s32.totalorder %s10, 0
    %p51 = por %p49, %p50
    %p52 = scmp.ne.s32.totalorder %s44, %s46
    %p53 = scmp.eq.s32.totalorder %s15, 1
    %p54 = por %p52, %p53
    %p55 = scmp.ne.s32.totalorder %s46, %s47
    %p56 = scmp.eq.s32.totalorder %s15, 0
    %p57 = por %p55, %p56
    %p58 = scmp.ne.s32.totalorder %s46, %s47
    %p59 = scmp.eq.s32.totalorder %s16, 1
    %p60 = por %p58, %p59
    %p62 = scmp.ne.s32.totalorder %s47, %s61
    %p63 = scmp.eq.s32.totalorder %s16, 0
    %p64 = por %p62, %p63
    %s66 = sadd.s32 %s65, 1
    %p69 = scmp.eq.s32.totalorder %s10, 1
    %p70 = scmp.ne.s32.totalorder %s65, %s67
    %p71 = scmp.eq.s32.totalorder %s10, 0
    %p72 = por %p70, %p71
    %p73 = scmp.ne.s32.totalorder %s65, %s67
    %p74 = scmp.eq.s32.totalorder %s15, 1
    %p75 = por %p73, %p74
    %p76 = scmp.ne.s32.totalorder %s67, %s68
    %p77 = scmp.eq.s32.totalorder %s15, 0
    %p78 = por %p76, %p77
    %p79 = scmp.ne.s32.totalorder %s67, %s68
    %p80 = scmp.eq.s32.totalorder %s16, 1
    %p81 = por %p79, %p80
    %p83 = scmp.ne.s32.totalorder %s68, %s82
    %p84 = scmp.eq.s32.totalorder %s16, 0
    %p85 = por %p83, %p84
    %s87 = sadd.s32 %s86, 1
    %p90 = scmp.eq.s32.totalorder %s10, 1
    %p91 = scmp.ne.s32.totalorder %s86, %s88
    %p92 = scmp.eq.s32.totalorder %s10, 0
    %p93 = por %p91, %p92
    %p94 = scmp.ne.s32.totalorder %s86, %s88
    %p95 = scmp.eq.s32.totalorder %s15, 1
    %p96 = por %p94, %p95
    %p97 = scmp.ne.s32.totalorder %s88, %s89
    %p98 = scmp.eq.s32.totalorder %s15, 0
    %p99 = por %p97, %p98
    %p100 = scmp.ne.s32.totalorder %s88, %s89
    %p101 = scmp.eq.s32.totalorder %s16, 1
    %p102 = por %p100, %p101
    %p104 = scmp.ne.s32.totalorder %s89, %s103
    %p105 = scmp.eq.s32.totalorder %s16, 0
    %p106 = por %p104, %p105
    %s107 = ssub.s32 %s10, %s17
    %p108 = scmp.eq.s32.totalorder %s107, 0
    %s110 = sadd.s32 %s109, 1
    %s111 = scalar_select %p108, %s109, %s110
    %p114 = pneg %p108
    %p115 = scmp.eq.s32.totalorder %s10, 1
    %p116 = por %p114, %p115
    %p117 = scmp.ne.s32.totalorder %s109, %s112
    %p118 = scmp.eq.s32.totalorder %s10, 0
    %p119 = por %p117, %p118
    %p120 = scmp.ne.s32.totalorder %s109, %s112
    %p121 = scmp.eq.s32.totalorder %s15, 1
    %p122 = por %p120, %p121
    %p123 = scmp.ne.s32.totalorder %s112, %s113
    %p124 = scmp.eq.s32.totalorder %s15, 0
    %p125 = por %p123, %p124
    %p126 = scmp.ne.s32.totalorder %s112, %s113
    %p127 = scmp.eq.s32.totalorder %s16, 1
    %p128 = por %p126, %p127
    %p130 = scmp.ne.s32.totalorder %s113, %s129
    %p131 = scmp.eq.s32.totalorder %s16, 0
    %p132 = por %p130, %p131
    %p133 = scmp.le.s32.totalorder 1, %s10
    %p134 = scmp.lt.s32.totalorder %s10, 3
    %p135 = pnand %p133, %p134
    %p136 = pneg %p135
    // Predicated region
    $region9: #{a_call__.4} parent=5 // pred_check
      _
    $region10: #{a_call__.4} parent=5 // pred_check_branch
      %138 = sbr.rel (%p135) target = $region12
    $region11: #{a_call__.4} parent=5 // pred_region
      %s139 = ssub.s32 %s10, 1
      // Predicated region
      $region13: #{a_call__.4} parent=11 // pred_check
        %p140 = pneg %p57
      $region14: #{a_call__.4} parent=11 // pred_check_branch
        %142 = sbr.rel (%p140) target = $region16
      $region15: #{a_call__.4} parent=11 // pred_region
        _
      $region16: #{a_call__.4} parent=11 // pred_fallthru
        _
      // Predicated region
      $region17: #{a_call__.4} parent=11 // pred_check
        %p143 = pneg %p78
      $region18: #{a_call__.4} parent=11 // pred_check_branch
        %145 = sbr.rel (%p143) target = $region20
      $region19: #{a_call__.4} parent=11 // pred_region
        _
      $region20: #{a_call__.4} parent=11 // pred_fallthru
        _
      // Predicated region
      $region21: #{a_call__.4} parent=11 // pred_check
        %p146 = pneg %p99
      $region22: #{a_call__.4} parent=11 // pred_check_branch
        %148 = sbr.rel (%p146) target = $region24
      $region23: #{a_call__.4} parent=11 // pred_region
        _
      $region24: #{a_call__.4} parent=11 // pred_fallthru
        _
    $region12: #{a_call__.4} parent=5 // pred_fallthru
      _
    %p149 = scmp.lt.s32.totalorder %s10, 2
    // Predicated region
    $region25: #{a_call__.4} parent=5 // pred_check
      %p150 = pneg %p149
    $region26: #{a_call__.4} parent=5 // pred_check_branch
      %152 = sbr.rel (%p150) target = $region28
    $region27: #{a_call__.4} parent=5 // pred_region
      // Predicated region
      $region29: #{a_call__.4} parent=27 // pred_check
        %p153 = pneg %p30
      $region30: #{a_call__.4} parent=27 // pred_check_branch
        %155 = sbr.rel (%p153) target = $region32
      $region31: #{a_call__.4} parent=27 // pred_region
        %p156 = scmp.lt.s32.totalorder %s10, 1
        %s157 = scalar_select %p156, %s10, 1
        %s158 = smul.addr %s157, 4
        %s159 = smul.addr %s158, 2
        %s160 = scalar_lea.vmem %s0, %s159
      $region32: #{a_call__.4} parent=27 // pred_fallthru
        _
    $region28: #{a_call__.4} parent=5 // pred_fallthru
      _
    %p161 = scmp.le.s32.totalorder 1, %s10
    %p162 = scmp.lt.s32.totalorder %s10, 3
    %p163 = pnand %p161, %p162
    %p164 = pneg %p163
    // Predicated region
    $region33: #{a_call__.4} parent=5 // pred_check
      _
    $region34: #{a_call__.4} parent=5 // pred_check_branch
      %166 = sbr.rel (%p163) target = $region36
    $region35: #{a_call__.4} parent=5 // pred_region
      %s167 = ssub.s32 %s10, 1
      %p168 = scmp.lt.s32.totalorder %s15, 1
      %s169 = scalar_select %p168, %s15, 1
      %s170 = smul.addr %s169, 4
      %s171 = smul.addr %s170, 2
      %s172 = scalar_lea.vmem %s0, %s171
      %p173 = pneg %p36
      %p174 = pneg %p33
      %p175 = pneg %p57
      %p176 = pneg %p54
      %p177 = pneg %p78
      %p178 = pneg %p75
      %p179 = pneg %p99
      %p180 = pneg %p96
      %p181 = pneg %p125
      %p182 = pneg %p122
      %p183 = scmp.lt.s32.totalorder %s15, 1
      %s184 = scalar_select %p183, %s15, 1
      %s185 = smul.addr %s184, 8
      %s186 = smul.addr %s185, 4
      %s187 = scalar_lea.vmem %s4, %s186
      %p188 = scmp.lt.s32.totalorder %s15, 1
      %s189 = scalar_select %p188, %s15, 1
      %s190 = smul.addr %s189, 4
      %s191 = smul.addr %s190, 2
      %s192 = scalar_lea.vmem %s0, %s191
      %p193 = scmp.lt.s32.totalorder %s15, 1
      %s194 = scalar_select %p193, %s15, 1
      %s195 = smul.addr %s194, 8
      %s196 = smul.addr %s195, 4
      %s197 = scalar_lea.vmem %s4, %s196
      %v199 = vld [vmem:[%s192] sm:$0xff]
      %v200 = vld [vmem:[%s1] sm:$0xf]
      %v201 = vld [vmem:[%s1 + $0x4] sm:$0xf]
      %v202 = vld [vmem:[%s2] sm:$0xff]
      %v203 = vld [vmem:[%s2 + $0x8] sm:$0xff]
      %205 = vset.pattern.permute.xlu0 0
      %206 = vperm.xlu0 %205, %v202
      %v207 = vpop.permute.xlu0 %206
      %210 = vset.pattern.permute.xlu0 0
      %211 = vperm.xlu0 %210, %v203
      %v212 = vpop.permute.xlu0 %211
      %v216 = vunpack.c.l.b16 %v200
      %v217 = vunpack.c.l.b16 %v201
      %v218 = vpack.c.b16 %v217, %v216
      %220 = vst [vmem:[#allocation1] ss:$4 sm:$0xff] %v199
      %v221 = vld.sshfl [vmem:[#allocation1] sm:$0xff pattern:$0x73625140]
      %v222 = vld.sshfl [vmem:[#allocation1 + $0x8] sm:$0xff pattern:$0x73625140]
      %v223 = vld.sshfl [vmem:[#allocation1 + $0x10] sm:$0xff pattern:$0x73625140]
      %v224 = vld.sshfl [vmem:[#allocation1 + $0x18] sm:$0xff pattern:$0x73625140]
      %vm225 = vcmask 31744
      %v227 = vsel %vm225, %v218, 0
      %vm229 = vcmask 1041408
      %v230 = vsel %vm229, %v221, 0
      %v232 = vsel %vm229, %v222, 0
      %v234 = vsel %vm229, %v223, 0
      %v236 = vsel %vm229, %v224, 0
      %238 = vmatpush.bf16.msra.mxu0 0
      %239 = vmatpush.bf16.msra.mxu0 0
      %240 = vmatpush.bf16.msra.mxu0 0
      %241 = vmatpush.bf16.msra.mxu0 0
      %242 = vmatpush.bf16.msra.mxu0 0
      %243 = vmatpush.bf16.msra.mxu0 0
      %244 = vmatpush.bf16.msra.mxu0 0
      %245 = vmatpush.bf16.msra.mxu0 %v230
      %246 = vmatmul.bf16.gmra.mxu0 %v227
      %v247 = vpop.f32.mrf.mxu0
      %v248 = vadd.f32 %v207, %v247
      %v249 = vpop.f32.mrf.mxu0
      %v250 = vadd.f32 %v212, %v249
      %251 = vdwg.mxu0
      %252 = vmatpush.bf16.msra.mxu0 0
      %253 = vmatpush.bf16.msra.mxu0 0
      %254 = vmatpush.bf16.msra.mxu0 0
      %255 = vmatpush.bf16.msra.mxu0 0
      %256 = vmatpush.bf16.msra.mxu0 0
      %257 = vmatpush.bf16.msra.mxu0 0
      %258 = vmatpush.bf16.msra.mxu0 0
      %259 = vmatpush.bf16.msra.mxu0 %v232
      %260 = vmatmul.bf16.gmra.mxu0 %v227
      %v261 = vpop.f32.mrf.mxu0
      %v262 = vadd.f32 %v207, %v261
      %v263 = vpop.f32.mrf.mxu0
      %v264 = vadd.f32 %v212, %v263
      %265 = vdwg.mxu0
      %266 = vmatpush.bf16.msra.mxu0 0
      %267 = vmatpush.bf16.msra.mxu0 0
      %268 = vmatpush.bf16.msra.mxu0 0
      %269 = vmatpush.bf16.msra.mxu0 0
      %270 = vmatpush.bf16.msra.mxu0 0
      %271 = vmatpush.bf16.msra.mxu0 0
      %272 = vmatpush.bf16.msra.mxu0 0
      %273 = vmatpush.bf16.msra.mxu0 %v234
      %274 = vmatmul.bf16.gmra.mxu0 %v227
      %v275 = vpop.f32.mrf.mxu0
      %v276 = vadd.f32 %v207, %v275
      %v277 = vpop.f32.mrf.mxu0
      %v278 = vadd.f32 %v212, %v277
      %279 = vdwg.mxu0
      %280 = vmatpush.bf16.msra.mxu0 0
      %281 = vmatpush.bf16.msra.mxu0 0
      %282 = vmatpush.bf16.msra.mxu0 0
      %283 = vmatpush.bf16.msra.mxu0 0
      %284 = vmatpush.bf16.msra.mxu0 0
      %285 = vmatpush.bf16.msra.mxu0 0
      %286 = vmatpush.bf16.msra.mxu0 0
      %287 = vmatpush.bf16.msra.mxu0 %v236
      %288 = vmatmul.bf16.gmra.mxu0 %v227
      %v289 = vpop.f32.mrf.mxu0
      %v290 = vadd.f32 %v207, %v289
      %v291 = vpop.f32.mrf.mxu0
      %v292 = vadd.f32 %v212, %v291
      %293 = vdwg.mxu0
      %v294 = vmax.f32 %v248, 0.0
      %v295 = vmax.f32 %v262, 0.0
      %v296 = vmax.f32 %v276, 0.0
      %v297 = vmax.f32 %v290, 0.0
      %v298 = vmax.f32 %v250, 0.0
      %v299 = vmax.f32 %v264, 0.0
      %v300 = vmax.f32 %v278, 0.0
      %v301 = vmax.f32 %v292, 0.0
      %v302 = vld [vmem:[%s3] sm:$0xf]
      %v304 = vperm.slane %v302, 0
      %v305 = vperm.slane %v302, 1
      %v306 = vperm.slane %v302, 2
      %v307 = vperm.slane %v302, 3
      %v312 = vmul.f32 %v294, %v304
      %v313 = vmul.f32 %v295, %v305
      %v314 = vmul.f32 %v296, %v306
      %v315 = vmul.f32 %v297, %v307
      %v316 = vmul.f32 %v298, %v304
      %v317 = vmul.f32 %v299, %v305
      %v318 = vmul.f32 %v300, %v306
      %v319 = vmul.f32 %v301, %v307
      %v320 = vpack.c.bf16 %v313, %v312
      %v321 = vpack.c.bf16 %v315, %v314
      %v322 = vpack.c.bf16 %v317, %v316
      %v323 = vpack.c.bf16 %v319, %v318
      %324 = vst [vmem:[%s197] sm:$0xff] %v320
      %325 = vst [vmem:[%s197 + $0x8] sm:$0xff] %v321
      %326 = vst [vmem:[%s197 + $0x10] sm:$0xff] %v322
      %327 = vst [vmem:[%s197 + $0x18] sm:$0xff] %v323
      %p328 = scmp.lt.s32.totalorder %s15, 1
      %s329 = scalar_select %p328, %s15, 1
      %s330 = smul.addr %s329, 8
      %s331 = smul.addr %s330, 4
      %s332 = scalar_lea.vmem %s4, %s331
      // Predicated region
      $region37: #{a_call__.4} parent=35 // pred_check
        %p333 = pneg %p122
      $region38: #{a_call__.4} parent=35 // pred_check_branch
        %335 = sbr.rel (%p333) target = $region40
      $region39: #{a_call__.4} parent=35 // pred_region
        _
      $region40: #{a_call__.4} parent=35 // pred_fallthru
        _
    $region36: #{a_call__.4} parent=5 // pred_fallthru
      _
    %p336 = scmp.le.s32.totalorder 2, %s10
    // Predicated region
    $region41: #{a_call__.4} parent=5 // pred_check
      %p337 = pneg %p336
    $region42: #{a_call__.4} parent=5 // pred_check_branch
      %339 = sbr.rel (%p337) target = $region44
    $region43: #{a_call__.4} parent=5 // pred_region
      %s340 = ssub.s32 %s10, 2
      // Predicated region
      $region45: #{a_call__.4} parent=43 // pred_check
        %p341 = pneg %p128
      $region46: #{a_call__.4} parent=43 // pred_check_branch
        %343 = sbr.rel (%p341) target = $region48
      $region47: #{a_call__.4} parent=43 // pred_region
        %p344 = scmp.lt.s32.totalorder %s16, 1
        %s345 = scalar_select %p344, %s16, 1
        %s346 = smul.addr %s345, 8
        %s347 = smul.addr %s346, 4
        %s348 = scalar_lea.vmem %s4, %s347
      $region48: #{a_call__.4} parent=43 // pred_fallthru
        _
    $region44: #{a_call__.4} parent=5 // pred_fallthru
      _
  $region6: #{a_call__.4} parent=0 // loop_footer
    %s14 = sadd.s32 1, %s10
  $region7: #{a_call__.4} parent=0 // loop_footer_branch
    %9 = sbr.rel target = $region3
  $region8: #{a_call__.4} parent=0 // loop_exit
    _

</llo_original>
